<compile_context>
chip_gen: v6e
topology: v6e:2x2x1
jax: 0.10.0
libtpu: 0.0.40
codegen_flags: <defaults>
</compile_context>

<pallas_src>
import functools

import numpy as np
import jax
import jax.numpy as jnp
from jax.experimental import pallas as pl
from jax.experimental.pallas import tpu as pltpu


def _round_up(x, m):
    return (x + m - 1) // m * m


def _pick_tile(total, target, align):
    """Largest multiple of `align` <= min(total, target) that divides `total`.
    `total` is itself a multiple of `align`."""
    t = min(total, target)
    t = (t // align) * align
    while total % t:
        t -= align
    return t


@functools.lru_cache(maxsize=None)
def _vmem_limit_bytes():
    # Per-generation VMEM budget: ~3/4 of physical VMEM, capped at 96 MiB
    # (v5e/v6e: 96 MiB, v7x: 48 MiB).  Falls back to a conservative 32 MiB.
    try:
        cap = pltpu.get_tpu_info().vmem_capacity_bytes
        return int(min(cap * 3 // 4, 96 * 1024 * 1024))
    except Exception:
        return 32 * 1024 * 1024


@functools.lru_cache(maxsize=None)
def _compiler_params(ndims):
    return pltpu.CompilerParams(
        dimension_semantics=("parallel",) * ndims,
        vmem_limit_bytes=_vmem_limit_bytes())


# torchvision resnet152: Bottleneck, layers = [3, 8, 36, 3]
LAYERS_CFG = [(64, 3, 1), (128, 8, 2), (256, 36, 2), (512, 3, 2)]


# ----------------------------- Pallas kernels ------------------------------ #

def _conv_kernel(x_ref, w_ref, b_ref, o_ref, *, relu):
    # One (tm, Kp) x (Kp, tn) MXU matmul with f32 accumulation, fused
    # folded-BN bias (+ReLU) epilogue, bf16 store.
    y = jnp.dot(x_ref[...], w_ref[...], preferred_element_type=jnp.float32)
    y = y + b_ref[...]
    if relu:
        y = jnp.maximum(y, 0.0)
    o_ref[...] = y.astype(o_ref.dtype)


def _conv_res_kernel(x_ref, w_ref, b_ref, r_ref, o_ref, *, relu):
    # conv3 of a bottleneck: matmul + folded-BN bias + residual add (+ReLU).
    y = jnp.dot(x_ref[...], w_ref[...], preferred_element_type=jnp.float32)
    y = y + b_ref[...] + r_ref[...].astype(jnp.float32)
    if relu:
        y = jnp.maximum(y, 0.0)
    o_ref[...] = y.astype(o_ref.dtype)


def _maxpool_kernel(x_ref, o_ref):
    # x_ref: (taps, tm, C) -> elementwise max over the taps axis (pure VPU).
    r = x_ref[0]
    for i in range(1, x_ref.shape[0]):
        r = jnp.maximum(r, x_ref[i])
    o_ref[...] = r


# --------------------------- cached pallas_calls ---------------------------- #

@functools.lru_cache(maxsize=None)
def _get_conv_call(Mp, Kp, Np, tm, tn, relu, has_res):
    MC, NC = Mp // tm, Np // tn
    kernel = functools.partial(_conv_res_kernel if has_res else _conv_kernel,
                               relu=relu)

    in_specs = [
        # Activation block keyed ONLY on the M tile: it stays resident in VMEM
        # while all NC output-channel tiles are produced (no NCx re-streaming).
        pl.BlockSpec((tm, Kp), lambda m, nb: (m, 0)),
        # Weight column block (Kp, tn): streamed / double-buffered per step.
        pl.BlockSpec((Kp, tn), lambda m, nb: (0, nb)),
        # Folded-BN bias (the BN scale is baked into the weights at build time).
        pl.BlockSpec((1, tn), lambda m, nb: (0, nb)),
    ]
    if has_res:
        in_specs.append(pl.BlockSpec((tm, tn), lambda m, nb: (m, nb)))

    flops = 2 * Mp * Kp * Np
    bytes_accessed = 2 * (Mp * Kp + MC * Kp * Np + Mp * Np) + 4 * Np
    if has_res:
        bytes_accessed += 2 * Mp * Np

    return pl.pallas_call(
        kernel,
        out_shape=jax.ShapeDtypeStruct((Mp, Np), jnp.bfloat16),
        grid=(MC, NC),
        in_specs=in_specs,
        out_specs=pl.BlockSpec((tm, tn), lambda m, nb: (m, nb)),
        compiler_params=_compiler_params(2),
        cost_estimate=pl.CostEstimate(flops=flops, transcendentals=0,
                                      bytes_accessed=bytes_accessed),
    )


@functools.lru_cache(maxsize=None)
def _get_maxpool_call(taps, Mp, C, tm):
    return pl.pallas_call(
        _maxpool_kernel,
        out_shape=jax.ShapeDtypeStruct((Mp, C), jnp.bfloat16),
        grid=(Mp // tm,),
        in_specs=[pl.BlockSpec((taps, tm, C), lambda m: (0, m, 0))],
        out_specs=pl.BlockSpec((tm, C), lambda m: (m, 0)),
        compiler_params=_compiler_params(1),
    )


# ------------------------------- conv wrapper ------------------------------- #

def conv_fused(x, wb, *, cout, kh, kw, stride, pad, relu, residual=None):
    """Fused conv + folded-BN (+residual) (+ReLU).  x: (N,H,W,Cin) bf16 NHWC."""
    w, bias = wb
    Kp, Np = w.shape
    n, h, ww, cin = x.shape
    ho = (h + 2 * pad - kh) // stride + 1
    wo = (ww + 2 * pad - kw) // stride + 1
    M = n * ho * wo
    tm = min(512, _round_up(M, 16))     # bf16 sublane packing -> multiple of 16
    Mp = _round_up(M, tm)

    if kh == 1 and kw == 1:
        if stride != 1:
            x = x[:, ::stride, ::stride, :]
        xcols = x.reshape(M, cin)
    else:
        # TODO(synk): im2col below still duplicates the activation kh*kw x in
        # HBM; replacing it with pl.ANY + per-tap in-kernel DMA is future work.
        xp = jnp.pad(x, ((0, 0), (pad, pad), (pad, pad), (0, 0)))
        taps = [xp[:, i:i + stride * (ho - 1) + 1:stride,
                   j:j + stride * (wo - 1) + 1:stride, :].reshape(M, cin)
                for i in range(kh) for j in range(kw)]
        xcols = jnp.concatenate(taps, axis=-1)      # taps folded into K
    kdim = xcols.shape[-1]
    xcols = jnp.pad(xcols, ((0, Mp - M), (0, Kp - kdim))).astype(jnp.bfloat16)

    tn = _pick_tile(Np, 256, 128)       # lane-dense (>=128) output tiles

    args = [xcols, w, bias]
    has_res = residual is not None
    if has_res:
        r2d = residual.reshape(M, cout)
        r2d = jnp.pad(r2d, ((0, Mp - M), (0, Np - cout))).astype(jnp.bfloat16)
        args.append(r2d)

    out = _get_conv_call(Mp, Kp, Np, tm, tn, bool(relu), has_res)(*args)
    return out[:M, :cout].reshape(n, ho, wo, cout)


def maxpool2d_3x3_s2(x):
    # 3x3 / stride-2 / pad-1 max pool, M-tiled Pallas kernel.
    # TODO(synk): the 9-tap stack is still materialized in HBM by XLA.
    n, h, w, c = x.shape
    ho = (h + 2 - 3) // 2 + 1
    wo = (w + 2 - 3) // 2 + 1
    M = n * ho * wo
    tm = min(512, _round_up(M, 16))
    Mp = _round_up(M, tm)
    xp = jnp.pad(x, ((0, 0), (1, 1), (1, 1), (0, 0)), constant_values=-jnp.inf)
    taps = [xp[:, i:i + 2 * (ho - 1) + 1:2,
               j:j + 2 * (wo - 1) + 1:2, :].reshape(M, c)
            for i in range(3) for j in range(3)]
    stacked = jnp.pad(jnp.stack(taps, axis=0), ((0, 0), (0, Mp - M), (0, 0)))
    out = _get_maxpool_call(9, Mp, c, tm)(stacked.astype(jnp.bfloat16))
    return out[:M].reshape(n, ho, wo, c)


# ---------------------------- parameters (synthetic) ------------------------ #

_RNG = np.random.RandomState(0)


def _make_conv(kh, kw, cin, cout, bn_scale=1.0):
    """Returns (w, bias): w is the folded conv+BN weight, pre-padded to
    (Kpad, Npad) bf16 with the BN scale baked in; bias is f32 (1, Npad)."""
    kdim = kh * kw * cin
    w = (_RNG.randn(kdim, cout) * np.sqrt(2.0 / kdim)).astype(np.float32)
    kp = _round_up(kdim, 128)
    npd = _round_up(cout, 128)
    wp = np.zeros((kp, npd), np.float32)
    wp[:kdim, :cout] = w * bn_scale          # fold gamma / sqrt(var+eps) into W
    bias = np.zeros((1, npd), np.float32)    # folded beta - mean * scale
    return (jnp.asarray(wp, dtype=jnp.bfloat16), jnp.asarray(bias))


def build_params():
    params = {"conv1": _make_conv(7, 7, 3, 64)}
    inplanes = 64
    stages = []
    for planes, nblocks, stride in LAYERS_CFG:
        blocks = []
        for bi in range(nblocks):
            s = stride if bi == 0 else 1
            blk = {
                "conv1": _make_conv(1, 1, inplanes, planes),
                "conv2": _make_conv(3, 3, planes, planes),
                # small bn3 scale keeps the synthetic 50-block-deep net finite
                "conv3": _make_conv(1, 1, planes, planes * 4, bn_scale=0.1),
                "downsample": (_make_conv(1, 1, inplanes, planes * 4)
                               if (s != 1 or inplanes != planes * 4) else None),
            }
            blocks.append(blk)
            inplanes = planes * 4
        stages.append(blocks)
    params["layers"] = stages
    return params


# --------------------------------- forward --------------------------------- #

@jax.jit
def stem_fwd(x_nchw, conv1_wb):
    # PyTorch input is NCHW; convert to NHWC bf16 for the kernels.
    x = jnp.transpose(x_nchw, (0, 2, 3, 1)).astype(jnp.bfloat16)
    x = conv_fused(x, conv1_wb, cout=64, kh=7, kw=7, stride=2, pad=3, relu=True)
    return maxpool2d_3x3_s2(x)


@functools.partial(jax.jit, static_argnames=("planes", "stride"))
def bottleneck_fwd(x, blk, *, planes, stride):
    identity = x
    out = conv_fused(x, blk["conv1"], cout=planes,
                     kh=1, kw=1, stride=1, pad=0, relu=True)
    out = conv_fused(out, blk["conv2"], cout=planes,
                     kh=3, kw=3, stride=stride, pad=1, relu=True)
    if blk["downsample"] is not None:
        identity = conv_fused(x, blk["downsample"], cout=planes * 4,
                              kh=1, kw=1, stride=stride, pad=0, relu=False)
    # fused: matmul + folded BN bias + residual add + ReLU
    return conv_fused(out, blk["conv3"], cout=planes * 4,
                      kh=1, kw=1, stride=1, pad=0, relu=True, residual=identity)


def resnet152_forward(x_nchw, weights):
    x = stem_fwd(x_nchw, weights["conv1"])
    for (planes, _, stride), stage_w in zip(LAYERS_CFG, weights["layers"]):
        for bi, blk in enumerate(stage_w):
            s = stride if bi == 0 else 1
            x = bottleneck_fwd(x, blk, planes=planes, stride=s)
    # avgpool = Identity, fc = Identity  ->  torch.flatten(x, 1) in NCHW order
    n = x.shape[0]
    return jnp.transpose(x, (0, 3, 1, 2)).reshape(n, -1).astype(jnp.float32)


if __name__ == "__main__":
    key = jax.random.PRNGKey(0)
    # batch=2, channels=3 (RGB), spatial=32 (minimum that survives /32 downsampling)
    x = jax.random.normal(key, (2, 3, 32, 32), dtype=jnp.float32)
    params = build_params()
    out = resnet152_forward(x, params)
    out = jax.block_until_ready(out)
    assert out.shape == (2, 2048), out.shape          # 2048 * 1 * 1 features
    assert bool(jnp.all(jnp.isfinite(out)))
    print("KERNEL_OK")
</pallas_src>

<mosaic_0001>
module attributes {stable_mosaic.version = 11 : i64} {
  func.func @_conv_kernel(%arg0: i32, %arg1: i32, %arg2: memref<512x256xbf16, #tpu.memory_space<vmem>>, %arg3: memref<256x128xbf16, #tpu.memory_space<vmem>>, %arg4: memref<1x128xf32, #tpu.memory_space<vmem>>, %arg5: memref<512x128xbf16, #tpu.memory_space<vmem>>) attributes {dimension_semantics = [#tpu.dimension_semantics<parallel>, #tpu.dimension_semantics<parallel>], iteration_bounds = array<i64: 1, 1>, scalar_prefetch = 0 : i64, scratch_operands = 0 : i64, tpu.core_type = #tpu.core_type<tc>, window_params = [{transform_indices = @transform_0, window_bounds = array<i64: 512, 256>}, {transform_indices = @transform_1, window_bounds = array<i64: 256, 128>}, {transform_indices = @transform_2, window_bounds = array<i64: 1, 128>}, {transform_indices = @transform_3, window_bounds = array<i64: 512, 128>}]} {
    %c0 = arith.constant 0 : index
    %c0_0 = arith.constant 0 : index
    %0 = vector.load %arg2[%c0, %c0_0] : memref<512x256xbf16, #tpu.memory_space<vmem>>, vector<512x256xbf16>
    %c0_1 = arith.constant 0 : index
    %c0_2 = arith.constant 0 : index
    %1 = vector.load %arg3[%c0_1, %c0_2] : memref<256x128xbf16, #tpu.memory_space<vmem>>, vector<256x128xbf16>
    %cst = arith.constant dense<0.000000e+00> : vector<512x128xf32>
    %2 = tpu.matmul %0, %1, %cst {dimension_numbers = #tpu.dot_dimension_numbers<[1], [0], [0], [1], [0, 0, 1, 1], [], []>} : vector<512x256xbf16>, vector<256x128xbf16>, vector<512x128xf32> -> vector<512x128xf32>
    %c0_3 = arith.constant 0 : index
    %c0_4 = arith.constant 0 : index
    %3 = vector.load %arg4[%c0_3, %c0_4] : memref<1x128xf32, #tpu.memory_space<vmem>>, vector<1x128xf32>
    %4 = vector.broadcast %3 : vector<1x128xf32> to vector<512x128xf32>
    %5 = arith.addf %2, %4 : vector<512x128xf32>
    %cst_5 = arith.constant 0.000000e+00 : f32
    %6 = vector.broadcast %cst_5 : f32 to vector<512x128xf32>
    %7 = arith.maximumf %5, %6 : vector<512x128xf32>
    %8 = arith.truncf %7 : vector<512x128xf32> to vector<512x128xbf16>
    %c0_6 = arith.constant 0 : index
    %c0_7 = arith.constant 0 : index
    %9 = vector.load %arg5[%c0_6, %c0_7] : memref<512x128xbf16, #tpu.memory_space<vmem>>, vector<512x128xbf16>
    tpu.vector_store %arg5[%c0_6, %c0_7], %8 {strides = array<i32>} : memref<512x128xbf16, #tpu.memory_space<vmem>>, vector<512x128xbf16>,
    return
  }
  func.func @transform_0(%arg0: i32, %arg1: i32) -> (i32, i32) {
    %c0_i32 = arith.constant 0 : i32
    %c0_i32_0 = arith.constant 0 : i32
    return %arg0, %c0_i32 : i32, i32
  }
  func.func @transform_1(%arg0: i32, %arg1: i32) -> (i32, i32) {
    %c0_i32 = arith.constant 0 : i32
    %c0_i32_0 = arith.constant 0 : i32
    return %c0_i32, %arg1 : i32, i32
  }
  func.func @transform_2(%arg0: i32, %arg1: i32) -> (i32, i32) {
    %c0_i32 = arith.constant 0 : i32
    %c0_i32_0 = arith.constant 0 : i32
    return %c0_i32, %arg1 : i32, i32
  }
  func.func @transform_3(%arg0: i32, %arg1: i32) -> (i32, i32) {
    %c0_i32 = arith.constant 0 : i32
    return %arg0, %arg1 : i32, i32
  }
}

module attributes {stable_mosaic.version = 11 : i64} {
  func.func @_maxpool_kernel(%arg0: i32, %arg1: memref<9x128x64xbf16, #tpu.memory_space<vmem>>, %arg2: memref<128x64xbf16, #tpu.memory_space<vmem>>) attributes {dimension_semantics = [#tpu.dimension_semantics<parallel>], iteration_bounds = array<i64: 1>, scalar_prefetch = 0 : i64, scratch_operands = 0 : i64, tpu.core_type = #tpu.core_type<tc>, window_params = [{transform_indices = @transform_0, window_bounds = array<i64: 9, 128, 64>}, {transform_indices = @transform_1, window_bounds = array<i64: 128, 64>}]} {
    %c0 = arith.constant 0 : index
    %c0_0 = arith.constant 0 : index
    %c0_1 = arith.constant 0 : index
    %0 = vector.load %arg1[%c0, %c0_0, %c0_1] : memref<9x128x64xbf16, #tpu.memory_space<vmem>>, vector<1x128x64xbf16>
    %1 = vector.shape_cast %0 : vector<1x128x64xbf16> to vector<128x64xbf16>
    %c1 = arith.constant 1 : index
    %c0_2 = arith.constant 0 : index
    %c0_3 = arith.constant 0 : index
    %2 = vector.load %arg1[%c1, %c0_2, %c0_3] : memref<9x128x64xbf16, #tpu.memory_space<vmem>>, vector<1x128x64xbf16>
    %3 = vector.shape_cast %2 : vector<1x128x64xbf16> to vector<128x64xbf16>
    %4 = arith.maximumf %1, %3 : vector<128x64xbf16>
    %c2 = arith.constant 2 : index
    %c0_4 = arith.constant 0 : index
    %c0_5 = arith.constant 0 : index
    %5 = vector.load %arg1[%c2, %c0_4, %c0_5] : memref<9x128x64xbf16, #tpu.memory_space<vmem>>, vector<1x128x64xbf16>
    %6 = vector.shape_cast %5 : vector<1x128x64xbf16> to vector<128x64xbf16>
    %7 = arith.maximumf %4, %6 : vector<128x64xbf16>
    %c3 = arith.constant 3 : index
    %c0_6 = arith.constant 0 : index
    %c0_7 = arith.constant 0 : index
    %8 = vector.load %arg1[%c3, %c0_6, %c0_7] : memref<9x128x64xbf16, #tpu.memory_space<vmem>>, vector<1x128x64xbf16>
    %9 = vector.shape_cast %8 : vector<1x128x64xbf16> to vector<128x64xbf16>
    %10 = arith.maximumf %7, %9 : vector<128x64xbf16>
    %c4 = arith.constant 4 : index
    %c0_8 = arith.constant 0 : index
    %c0_9 = arith.constant 0 : index
    %11 = vector.load %arg1[%c4, %c0_8, %c0_9] : memref<9x128x64xbf16, #tpu.memory_space<vmem>>, vector<1x128x64xbf16>
    %12 = vector.shape_cast %11 : vector<1x128x64xbf16> to vector<128x64xbf16>
    %13 = arith.maximumf %10, %12 : vector<128x64xbf16>
    %c5 = arith.constant 5 : index
    %c0_10 = arith.constant 0 : index
    %c0_11 = arith.constant 0 : index
    %14 = vector.load %arg1[%c5, %c0_10, %c0_11] : memref<9x128x64xbf16, #tpu.memory_space<vmem>>, vector<1x128x64xbf16>
    %15 = vector.shape_cast %14 : vector<1x128x64xbf16> to vector<128x64xbf16>
    %16 = arith.maximumf %13, %15 : vector<128x64xbf16>
    %c6 = arith.constant 6 : index
    %c0_12 = arith.constant 0 : index
    %c0_13 = arith.constant 0 : index
    %17 = vector.load %arg1[%c6, %c0_12, %c0_13] : memref<9x128x64xbf16, #tpu.memory_space<vmem>>, vector<1x128x64xbf16>
    %18 = vector.shape_cast %17 : vector<1x128x64xbf16> to vector<128x64xbf16>
    %19 = arith.maximumf %16, %18 : vector<128x64xbf16>
    %c7 = arith.constant 7 : index
    %c0_14 = arith.constant 0 : index
    %c0_15 = arith.constant 0 : index
    %20 = vector.load %arg1[%c7, %c0_14, %c0_15] : memref<9x128x64xbf16, #tpu.memory_space<vmem>>, vector<1x128x64xbf16>
    %21 = vector.shape_cast %20 : vector<1x128x64xbf16> to vector<128x64xbf16>
    %22 = arith.maximumf %19, %21 : vector<128x64xbf16>
    %c8 = arith.constant 8 : index
    %c0_16 = arith.constant 0 : index
    %c0_17 = arith.constant 0 : index
    %23 = vector.load %arg1[%c8, %c0_16, %c0_17] : memref<9x128x64xbf16, #tpu.memory_space<vmem>>, vector<1x128x64xbf16>
    %24 = vector.shape_cast %23 : vector<1x128x64xbf16> to vector<128x64xbf16>
    %25 = arith.maximumf %22, %24 : vector<128x64xbf16>
    %c0_18 = arith.constant 0 : index
    %c0_19 = arith.constant 0 : index
    %26 = vector.load %arg2[%c0_18, %c0_19] : memref<128x64xbf16, #tpu.memory_space<vmem>>, vector<128x64xbf16>
    tpu.vector_store %arg2[%c0_18, %c0_19], %25 {strides = array<i32>} : memref<128x64xbf16, #tpu.memory_space<vmem>>, vector<128x64xbf16>,
    return
  }
  func.func @transform_0(%arg0: i32) -> (i32, i32, i32) {
    %c0_i32 = arith.constant 0 : i32
    %c0_i32_0 = arith.constant 0 : i32
    %c0_i32_1 = arith.constant 0 : i32
    return %c0_i32, %arg0, %c0_i32_0 : i32, i32, i32
  }
  func.func @transform_1(%arg0: i32) -> (i32, i32) {
    %c0_i32 = arith.constant 0 : i32
    %c0_i32_0 = arith.constant 0 : i32
    return %arg0, %c0_i32 : i32, i32
  }
}

</mosaic_0001>

<llo_original>
// kernel: stem_fwd.2
$region0: #{stem_fwd.2}
  #allocation0 [shape = 'u32[]', space=smem, size = 0x4, offset = 0x4, fixed_abs, tag = 'smem constant byte address 0x4 - core index']
  #allocation1 [shape = 'u32[144,128]{1,0:T(1,128)}', space=vmem, size = 0x12000, scoped, tag = 'internal scratch']
  %s0 = inlined_call_operand.vmem [shape: bf16[512,256], index: 0, kind: input, shape index: {}]
  %s1 = inlined_call_operand.vmem [shape: bf16[256,128], index: 1, kind: input, shape index: {}]
  %s2 = inlined_call_operand.vmem [shape: f32[1,128], index: 2, kind: input, shape index: {}]
  %s3 = inlined_call_operand.vmem [shape: bf16[512,128], index: 3, kind: output, shape index: {}]
  %s4 = sld [smem:[#allocation0]]
  $region22: #{stem_fwd.2} parent=0
    _
  %s6 = ssub.s32 1, %s4
  %s7 = scalar_select 0, %s6, %s4
  // Predicated region
  $region2: #{stem_fwd.2} parent=0 // pred_check
    _
  $region3: #{stem_fwd.2} parent=0 // pred_check_branch
    %9 = sbr.rel (0) target = $region5
  $region4: #{stem_fwd.2} parent=0 // pred_region
    _
  $region5: #{stem_fwd.2} parent=0 // pred_fallthru
    _
  // Predicated region
  $region6: #{stem_fwd.2} parent=0 // pred_check
    _
  $region7: #{stem_fwd.2} parent=0 // pred_check_branch
    %11 = sbr.rel (0) target = $region9
  $region8: #{stem_fwd.2} parent=0 // pred_region
    _
  $region9: #{stem_fwd.2} parent=0 // pred_fallthru
    _
  // Predicated region
  $region10: #{stem_fwd.2} parent=0 // pred_check
    _
  $region11: #{stem_fwd.2} parent=0 // pred_check_branch
    %13 = sbr.rel (0) target = $region13
  $region12: #{stem_fwd.2} parent=0 // pred_region
    _
  $region13: #{stem_fwd.2} parent=0 // pred_fallthru
    _
  %v15 = vld [vmem:[%s0] sm:$0xff]
  %v16 = vld [vmem:[%s0 + $0x8] sm:$0xff]
  %v17 = vld [vmem:[%s0 + $0x10] sm:$0xff]
  %v18 = vld [vmem:[%s0 + $0x18] sm:$0xff]
  %v19 = vld [vmem:[%s0 + $0x20] sm:$0xff]
  %v20 = vld [vmem:[%s0 + $0x28] sm:$0xff]
  %v21 = vld [vmem:[%s0 + $0x30] sm:$0xff]
  %v22 = vld [vmem:[%s0 + $0x38] sm:$0xff]
  %v23 = vld [vmem:[%s0 + $0x40] sm:$0xff]
  %v24 = vld [vmem:[%s0 + $0x48] sm:$0xff]
  %v25 = vld [vmem:[%s0 + $0x50] sm:$0xff]
  %v26 = vld [vmem:[%s0 + $0x58] sm:$0xff]
  %v27 = vld [vmem:[%s0 + $0x60] sm:$0xff]
  %v28 = vld [vmem:[%s0 + $0x68] sm:$0xff]
  %v29 = vld [vmem:[%s0 + $0x70] sm:$0xff]
  %v30 = vld [vmem:[%s0 + $0x78] sm:$0xff]
  %v31 = vld [vmem:[%s0 + $0x80] sm:$0xff]
  %v32 = vld [vmem:[%s0 + $0x88] sm:$0xff]
  %v33 = vld [vmem:[%s0 + $0x90] sm:$0xff]
  %v34 = vld [vmem:[%s0 + $0x98] sm:$0xff]
  %v35 = vld [vmem:[%s0 + $0xa0] sm:$0xff]
  %v36 = vld [vmem:[%s0 + $0xa8] sm:$0xff]
  %v37 = vld [vmem:[%s0 + $0xb0] sm:$0xff]
  %v38 = vld [vmem:[%s0 + $0xb8] sm:$0xff]
  %v39 = vld [vmem:[%s0 + $0xc0] sm:$0xff]
  %v40 = vld [vmem:[%s0 + $0xc8] sm:$0xff]
  %v41 = vld [vmem:[%s0 + $0xd0] sm:$0xff]
  %v42 = vld [vmem:[%s0 + $0xd8] sm:$0xff]
  %v43 = vld [vmem:[%s0 + $0xe0] sm:$0xff]
  %v44 = vld [vmem:[%s0 + $0xe8] sm:$0xff]
  %v45 = vld [vmem:[%s0 + $0xf0] sm:$0xff]
  %v46 = vld [vmem:[%s0 + $0xf8] sm:$0xff]
  %v47 = vld [vmem:[%s0 + $0x100] sm:$0xff]
  %v48 = vld [vmem:[%s0 + $0x108] sm:$0xff]
  %v49 = vld [vmem:[%s0 + $0x110] sm:$0xff]
  %v50 = vld [vmem:[%s0 + $0x118] sm:$0xff]
  %v51 = vld [vmem:[%s0 + $0x120] sm:$0xff]
  %v52 = vld [vmem:[%s0 + $0x128] sm:$0xff]
  %v53 = vld [vmem:[%s0 + $0x130] sm:$0xff]
  %v54 = vld [vmem:[%s0 + $0x138] sm:$0xff]
  %v55 = vld [vmem:[%s0 + $0x140] sm:$0xff]
  %v56 = vld [vmem:[%s0 + $0x148] sm:$0xff]
  %v57 = vld [vmem:[%s0 + $0x150] sm:$0xff]
  %v58 = vld [vmem:[%s0 + $0x158] sm:$0xff]
  %v59 = vld [vmem:[%s0 + $0x160] sm:$0xff]
  %v60 = vld [vmem:[%s0 + $0x168] sm:$0xff]
  %v61 = vld [vmem:[%s0 + $0x170] sm:$0xff]
  %v62 = vld [vmem:[%s0 + $0x178] sm:$0xff]
  %v63 = vld [vmem:[%s0 + $0x180] sm:$0xff]
  %v64 = vld [vmem:[%s0 + $0x188] sm:$0xff]
  %v65 = vld [vmem:[%s0 + $0x190] sm:$0xff]
  %v66 = vld [vmem:[%s0 + $0x198] sm:$0xff]
  %v67 = vld [vmem:[%s0 + $0x1a0] sm:$0xff]
  %v68 = vld [vmem:[%s0 + $0x1a8] sm:$0xff]
  %v69 = vld [vmem:[%s0 + $0x1b0] sm:$0xff]
  %v70 = vld [vmem:[%s0 + $0x1b8] sm:$0xff]
  %v71 = vld [vmem:[%s0 + $0x1c0] sm:$0xff]
  %v72 = vld [vmem:[%s0 + $0x1c8] sm:$0xff]
  %v73 = vld [vmem:[%s0 + $0x1d0] sm:$0xff]
  %v74 = vld [vmem:[%s0 + $0x1d8] sm:$0xff]
  %v75 = vld [vmem:[%s0 + $0x1e0] sm:$0xff]
  %v76 = vld [vmem:[%s0 + $0x1e8] sm:$0xff]
  %v77 = vld [vmem:[%s0 + $0x1f0] sm:$0xff]
  %v78 = vld [vmem:[%s0 + $0x1f8] sm:$0xff]
  %v79 = vld [vmem:[%s1] sm:$0xf]
  %v80 = vld [vmem:[%s1 + $0x4] sm:$0xf]
  %v81 = vld [vmem:[%s1 + $0x8] sm:$0xf]
  %v82 = vld [vmem:[%s1 + $0xc] sm:$0xf]
  %v83 = vld [vmem:[%s1 + $0x10] sm:$0xf]
  %v84 = vld [vmem:[%s1 + $0x14] sm:$0xf]
  %v85 = vld [vmem:[%s1 + $0x18] sm:$0xf]
  %v86 = vld [vmem:[%s1 + $0x1c] sm:$0xf]
  %v87 = vld [vmem:[%s1 + $0x20] sm:$0xf]
  %v88 = vld [vmem:[%s1 + $0x24] sm:$0xf]
  %v89 = vld [vmem:[%s1 + $0x28] sm:$0xf]
  %v90 = vld [vmem:[%s1 + $0x2c] sm:$0xf]
  %v91 = vld [vmem:[%s1 + $0x30] sm:$0xf]
  %v92 = vld [vmem:[%s1 + $0x34] sm:$0xf]
  %v93 = vld [vmem:[%s1 + $0x38] sm:$0xf]
  %v94 = vld [vmem:[%s1 + $0x3c] sm:$0xf]
  %v95 = vld [vmem:[%s1 + $0x40] sm:$0xf]
  %v96 = vld [vmem:[%s1 + $0x44] sm:$0xf]
  %v97 = vld [vmem:[%s1 + $0x48] sm:$0xf]
  %v98 = vld [vmem:[%s1 + $0x4c] sm:$0xf]
  %v99 = vld [vmem:[%s1 + $0x50] sm:$0xf]
  %v100 = vld [vmem:[%s1 + $0x54] sm:$0xf]
  %v101 = vld [vmem:[%s1 + $0x58] sm:$0xf]
  %v102 = vld [vmem:[%s1 + $0x5c] sm:$0xf]
  %v103 = vld [vmem:[%s1 + $0x60] sm:$0xf]
  %v104 = vld [vmem:[%s1 + $0x64] sm:$0xf]
  %v105 = vld [vmem:[%s1 + $0x68] sm:$0xf]
  %v106 = vld [vmem:[%s1 + $0x6c] sm:$0xf]
  %v107 = vld [vmem:[%s1 + $0x70] sm:$0xf]
  %v108 = vld [vmem:[%s1 + $0x74] sm:$0xf]
  %v109 = vld [vmem:[%s1 + $0x78] sm:$0xf]
  %v110 = vld [vmem:[%s1 + $0x7c] sm:$0xf]
  %v111 = vld [vmem:[%s2] sm:$0x1]
  %v113 = vlaneseq
  %v114 = vshrl.u32 %v113, 7
  %v115 = vsub.s32 0, %v114
  %v116 = vrot.slane %v111, %v115
  %v182 = vunpack.c.l.b16 %v15
  %v183 = vunpack.c.h.b16 %v15
  %v184 = vunpack.c.l.b16 %v16
  %v185 = vunpack.c.h.b16 %v16
  %v186 = vunpack.c.l.b16 %v17
  %v187 = vunpack.c.h.b16 %v17
  %v188 = vunpack.c.l.b16 %v18
  %v189 = vunpack.c.h.b16 %v18
  %v190 = vunpack.c.l.b16 %v19
  %v191 = vunpack.c.h.b16 %v19
  %v192 = vunpack.c.l.b16 %v20
  %v193 = vunpack.c.h.b16 %v20
  %v194 = vunpack.c.l.b16 %v21
  %v195 = vunpack.c.h.b16 %v21
  %v196 = vunpack.c.l.b16 %v22
  %v197 = vunpack.c.h.b16 %v22
  %v198 = vunpack.c.l.b16 %v23
  %v199 = vunpack.c.h.b16 %v23
  %v200 = vunpack.c.l.b16 %v24
  %v201 = vunpack.c.h.b16 %v24
  %v202 = vunpack.c.l.b16 %v25
  %v203 = vunpack.c.h.b16 %v25
  %v204 = vunpack.c.l.b16 %v26
  %v205 = vunpack.c.h.b16 %v26
  %v206 = vunpack.c.l.b16 %v27
  %v207 = vunpack.c.h.b16 %v27
  %v208 = vunpack.c.l.b16 %v28
  %v209 = vunpack.c.h.b16 %v28
  %v210 = vunpack.c.l.b16 %v29
  %v211 = vunpack.c.h.b16 %v29
  %v212 = vunpack.c.l.b16 %v30
  %v213 = vunpack.c.h.b16 %v30
  %v214 = vunpack.c.l.b16 %v31
  %v215 = vunpack.c.h.b16 %v31
  %v216 = vunpack.c.l.b16 %v32
  %v217 = vunpack.c.h.b16 %v32
  %v218 = vunpack.c.l.b16 %v33
  %v219 = vunpack.c.h.b16 %v33
  %v220 = vunpack.c.l.b16 %v34
  %v221 = vunpack.c.h.b16 %v34
  %v222 = vunpack.c.l.b16 %v35
  %v223 = vunpack.c.h.b16 %v35
  %v224 = vunpack.c.l.b16 %v36
  %v225 = vunpack.c.h.b16 %v36
  %v226 = vunpack.c.l.b16 %v37
  %v227 = vunpack.c.h.b16 %v37
  %v228 = vunpack.c.l.b16 %v38
  %v229 = vunpack.c.h.b16 %v38
  %v230 = vunpack.c.l.b16 %v39
  %v231 = vunpack.c.h.b16 %v39
  %v232 = vunpack.c.l.b16 %v40
  %v233 = vunpack.c.h.b16 %v40
  %v234 = vunpack.c.l.b16 %v41
  %v235 = vunpack.c.h.b16 %v41
  %v236 = vunpack.c.l.b16 %v42
  %v237 = vunpack.c.h.b16 %v42
  %v238 = vunpack.c.l.b16 %v43
  %v239 = vunpack.c.h.b16 %v43
  %v240 = vunpack.c.l.b16 %v44
  %v241 = vunpack.c.h.b16 %v44
  %v242 = vunpack.c.l.b16 %v45
  %v243 = vunpack.c.h.b16 %v45
  %v244 = vunpack.c.l.b16 %v46
  %v245 = vunpack.c.h.b16 %v46
  %v246 = vunpack.c.l.b16 %v47
  %v247 = vunpack.c.h.b16 %v47
  %v248 = vunpack.c.l.b16 %v48
  %v249 = vunpack.c.h.b16 %v48
  %v250 = vunpack.c.l.b16 %v49
  %v251 = vunpack.c.h.b16 %v49
  %v252 = vunpack.c.l.b16 %v50
  %v253 = vunpack.c.h.b16 %v50
  %v254 = vunpack.c.l.b16 %v51
  %v255 = vunpack.c.h.b16 %v51
  %v256 = vunpack.c.l.b16 %v52
  %v257 = vunpack.c.h.b16 %v52
  %v258 = vunpack.c.l.b16 %v53
  %v259 = vunpack.c.h.b16 %v53
  %v260 = vunpack.c.l.b16 %v54
  %v261 = vunpack.c.h.b16 %v54
  %v262 = vunpack.c.l.b16 %v55
  %v263 = vunpack.c.h.b16 %v55
  %v264 = vunpack.c.l.b16 %v56
  %v265 = vunpack.c.h.b16 %v56
  %v266 = vunpack.c.l.b16 %v57
  %v267 = vunpack.c.h.b16 %v57
  %v268 = vunpack.c.l.b16 %v58
  %v269 = vunpack.c.h.b16 %v58
  %v270 = vunpack.c.l.b16 %v59
  %v271 = vunpack.c.h.b16 %v59
  %v272 = vunpack.c.l.b16 %v60
  %v273 = vunpack.c.h.b16 %v60
  %v274 = vunpack.c.l.b16 %v61
  %v275 = vunpack.c.h.b16 %v61
  %v276 = vunpack.c.l.b16 %v62
  %v277 = vunpack.c.h.b16 %v62
  %v278 = vunpack.c.l.b16 %v63
  %v279 = vunpack.c.h.b16 %v63
  %v280 = vunpack.c.l.b16 %v64
  %v281 = vunpack.c.h.b16 %v64
  %v282 = vunpack.c.l.b16 %v65
  %v283 = vunpack.c.h.b16 %v65
  %v284 = vunpack.c.l.b16 %v66
  %v285 = vunpack.c.h.b16 %v66
  %v286 = vunpack.c.l.b16 %v67
  %v287 = vunpack.c.h.b16 %v67
  %v288 = vunpack.c.l.b16 %v68
  %v289 = vunpack.c.h.b16 %v68
  %v290 = vunpack.c.l.b16 %v69
  %v291 = vunpack.c.h.b16 %v69
  %v292 = vunpack.c.l.b16 %v70
  %v293 = vunpack.c.h.b16 %v70
  %v294 = vunpack.c.l.b16 %v71
  %v295 = vunpack.c.h.b16 %v71
  %v296 = vunpack.c.l.b16 %v72
  %v297 = vunpack.c.h.b16 %v72
  %v298 = vunpack.c.l.b16 %v73
  %v299 = vunpack.c.h.b16 %v73
  %v300 = vunpack.c.l.b16 %v74
  %v301 = vunpack.c.h.b16 %v74
  %v302 = vunpack.c.l.b16 %v75
  %v303 = vunpack.c.h.b16 %v75
  %v304 = vunpack.c.l.b16 %v76
  %v305 = vunpack.c.h.b16 %v76
  %v306 = vunpack.c.l.b16 %v77
  %v307 = vunpack.c.h.b16 %v77
  %v308 = vunpack.c.l.b16 %v78
  %v309 = vunpack.c.h.b16 %v78
  %v310 = vpack.c.b16 %v184, %v182
  %v311 = vpack.c.b16 %v185, %v183
  %v312 = vpack.c.b16 %v188, %v186
  %v313 = vpack.c.b16 %v189, %v187
  %v314 = vpack.c.b16 %v192, %v190
  %v315 = vpack.c.b16 %v193, %v191
  %v316 = vpack.c.b16 %v196, %v194
  %v317 = vpack.c.b16 %v197, %v195
  %v318 = vpack.c.b16 %v200, %v198
  %v319 = vpack.c.b16 %v201, %v199
  %v320 = vpack.c.b16 %v204, %v202
  %v321 = vpack.c.b16 %v205, %v203
  %v322 = vpack.c.b16 %v208, %v206
  %v323 = vpack.c.b16 %v209, %v207
  %v324 = vpack.c.b16 %v212, %v210
  %v325 = vpack.c.b16 %v213, %v211
  %v326 = vpack.c.b16 %v216, %v214
  %v327 = vpack.c.b16 %v217, %v215
  %v328 = vpack.c.b16 %v220, %v218
  %v329 = vpack.c.b16 %v221, %v219
  %v330 = vpack.c.b16 %v224, %v222
  %v331 = vpack.c.b16 %v225, %v223
  %v332 = vpack.c.b16 %v228, %v226
  %v333 = vpack.c.b16 %v229, %v227
  %v334 = vpack.c.b16 %v232, %v230
  %v335 = vpack.c.b16 %v233, %v231
  %v336 = vpack.c.b16 %v236, %v234
  %v337 = vpack.c.b16 %v237, %v235
  %v338 = vpack.c.b16 %v240, %v238
  %v339 = vpack.c.b16 %v241, %v239
  %v340 = vpack.c.b16 %v244, %v242
  %v341 = vpack.c.b16 %v245, %v243
  %v342 = vpack.c.b16 %v248, %v246
  %v343 = vpack.c.b16 %v249, %v247
  %v344 = vpack.c.b16 %v252, %v250
  %v345 = vpack.c.b16 %v253, %v251
  %v346 = vpack.c.b16 %v256, %v254
  %v347 = vpack.c.b16 %v257, %v255
  %v348 = vpack.c.b16 %v260, %v258
  %v349 = vpack.c.b16 %v261, %v259
  %v350 = vpack.c.b16 %v264, %v262
  %v351 = vpack.c.b16 %v265, %v263
  %v352 = vpack.c.b16 %v268, %v266
  %v353 = vpack.c.b16 %v269, %v267
  %v354 = vpack.c.b16 %v272, %v270
  %v355 = vpack.c.b16 %v273, %v271
  %v356 = vpack.c.b16 %v276, %v274
  %v357 = vpack.c.b16 %v277, %v275
  %v358 = vpack.c.b16 %v280, %v278
  %v359 = vpack.c.b16 %v281, %v279
  %v360 = vpack.c.b16 %v284, %v282
  %v361 = vpack.c.b16 %v285, %v283
  %v362 = vpack.c.b16 %v288, %v286
  %v363 = vpack.c.b16 %v289, %v287
  %v364 = vpack.c.b16 %v292, %v290
  %v365 = vpack.c.b16 %v293, %v291
  %v366 = vpack.c.b16 %v296, %v294
  %v367 = vpack.c.b16 %v297, %v295
  %v368 = vpack.c.b16 %v300, %v298
  %v369 = vpack.c.b16 %v301, %v299
  %v370 = vpack.c.b16 %v304, %v302
  %v371 = vpack.c.b16 %v305, %v303
  %v372 = vpack.c.b16 %v308, %v306
  %v373 = vpack.c.b16 %v309, %v307
  %v470 = vunpack.c.l.b16 %v79
  %v471 = vunpack.c.l.b16 %v80
  %v472 = vunpack.c.l.b16 %v81
  %v473 = vunpack.c.l.b16 %v82
  %v474 = vunpack.c.l.b16 %v83
  %v475 = vunpack.c.l.b16 %v84
  %v476 = vunpack.c.l.b16 %v85
  %v477 = vunpack.c.l.b16 %v86
  %v478 = vunpack.c.l.b16 %v87
  %v479 = vunpack.c.l.b16 %v88
  %v480 = vunpack.c.l.b16 %v89
  %v481 = vunpack.c.l.b16 %v90
  %v482 = vunpack.c.l.b16 %v91
  %v483 = vunpack.c.l.b16 %v92
  %v484 = vunpack.c.l.b16 %v93
  %v485 = vunpack.c.l.b16 %v94
  %v486 = vunpack.c.l.b16 %v95
  %v487 = vunpack.c.l.b16 %v96
  %v488 = vunpack.c.l.b16 %v97
  %v489 = vunpack.c.l.b16 %v98
  %v490 = vunpack.c.l.b16 %v99
  %v491 = vunpack.c.l.b16 %v100
  %v492 = vunpack.c.l.b16 %v101
  %v493 = vunpack.c.l.b16 %v102
  %v494 = vunpack.c.l.b16 %v103
  %v495 = vunpack.c.l.b16 %v104
  %v496 = vunpack.c.l.b16 %v105
  %v497 = vunpack.c.l.b16 %v106
  %v498 = vunpack.c.l.b16 %v107
  %v499 = vunpack.c.l.b16 %v108
  %v500 = vunpack.c.l.b16 %v109
  %v501 = vunpack.c.l.b16 %v110
  %v502 = vpack.c.b16 %v471, %v470
  %v503 = vpack.c.b16 %v473, %v472
  %v504 = vpack.c.b16 %v475, %v474
  %v505 = vpack.c.b16 %v477, %v476
  %v506 = vpack.c.b16 %v479, %v478
  %v507 = vpack.c.b16 %v481, %v480
  %v508 = vpack.c.b16 %v483, %v482
  %v509 = vpack.c.b16 %v485, %v484
  %v510 = vpack.c.b16 %v487, %v486
  %v511 = vpack.c.b16 %v489, %v488
  %v512 = vpack.c.b16 %v491, %v490
  %v513 = vpack.c.b16 %v493, %v492
  %v514 = vpack.c.b16 %v495, %v494
  %v515 = vpack.c.b16 %v497, %v496
  %v516 = vpack.c.b16 %v499, %v498
  %v517 = vpack.c.b16 %v501, %v500
  %534 = vmatprep.subr.bf16.mxu0 0
  %535 = vmatpush1.bf16.msra.mxu0 %v509
  %536 = vmatprep.subr.bf16.mxu0 0
  %537 = vmatpush1.bf16.msra.mxu0 %v508
  %538 = vmatprep.subr.bf16.mxu0 0
  %539 = vmatpush1.bf16.msra.mxu0 %v507
  %540 = vmatprep.subr.bf16.mxu0 0
  %541 = vmatpush1.bf16.msra.mxu0 %v506
  %542 = vmatprep.subr.bf16.mxu0 0
  %543 = vmatpush1.bf16.msra.mxu0 %v505
  %544 = vmatprep.subr.bf16.mxu0 0
  %545 = vmatpush1.bf16.msra.mxu0 %v504
  %546 = vmatprep.subr.bf16.mxu0 0
  %547 = vmatpush1.bf16.msra.mxu0 %v503
  %548 = vmatprep.subr.bf16.mxu0 0
  %549 = vmatpush1.bf16.msra.mxu0 %v502
  %550 = vmatprep.subr.bf16.mxu0 0
  %551 = vmatpush2.bf16.msra.mxu0 %v517
  %552 = vmatprep.subr.bf16.mxu0 0
  %553 = vmatpush2.bf16.msra.mxu0 %v516
  %554 = vmatprep.subr.bf16.mxu0 0
  %555 = vmatpush2.bf16.msra.mxu0 %v515
  %556 = vmatprep.subr.bf16.mxu0 0
  %557 = vmatpush2.bf16.msra.mxu0 %v514
  %558 = vmatprep.subr.bf16.mxu0 0
  %559 = vmatpush2.bf16.msra.mxu0 %v513
  %560 = vmatprep.subr.bf16.mxu0 0
  %561 = vmatpush2.bf16.msra.mxu0 %v512
  %562 = vmatprep.subr.bf16.mxu0 0
  %563 = vmatpush2.bf16.msra.mxu0 %v511
  %564 = vmatprep.subr.bf16.mxu0 0
  %565 = vmatpush2.bf16.msra.mxu0 %v510
  %566 = vmatprep.mubr.bf16.mxu0 %v311
  %567 = vmatmul.mubr.bf16.gmra.mxu0 %v310
  %v568 = vpop.f32.mrf.mxu0
  %v569 = vadd.f32 %v116, %v568
  %v570 = vpop.f32.mrf.mxu0
  %v571 = vpop.f32.mrf.mxu0
  %v572 = vadd.f32 %v116, %v571
  %v573 = vpop.f32.mrf.mxu0
  %574 = vmatprep.mubr.bf16.mxu0 %v313
  %575 = vmatmul.mubr.bf16.gmra.mxu0 %v312
  %v576 = vpop.f32.mrf.mxu0
  %v577 = vadd.f32 %v116, %v576
  %v578 = vpop.f32.mrf.mxu0
  %v579 = vpop.f32.mrf.mxu0
  %v580 = vadd.f32 %v116, %v579
  %v581 = vpop.f32.mrf.mxu0
  %582 = vmatprep.mubr.bf16.mxu0 %v315
  %583 = vmatmul.mubr.bf16.gmra.mxu0 %v314
  %v584 = vpop.f32.mrf.mxu0
  %v585 = vadd.f32 %v116, %v584
  %v586 = vpop.f32.mrf.mxu0
  %v587 = vpop.f32.mrf.mxu0
  %v588 = vadd.f32 %v116, %v587
  %v589 = vpop.f32.mrf.mxu0
  %590 = vmatprep.mubr.bf16.mxu0 %v317
  %591 = vmatmul.mubr.bf16.gmra.mxu0 %v316
  %v592 = vpop.f32.mrf.mxu0
  %v593 = vadd.f32 %v116, %v592
  %v594 = vpop.f32.mrf.mxu0
  %v595 = vpop.f32.mrf.mxu0
  %v596 = vadd.f32 %v116, %v595
  %v597 = vpop.f32.mrf.mxu0
  %598 = vmatprep.mubr.bf16.mxu0 %v319
  %599 = vmatmul.mubr.bf16.gmra.mxu0 %v318
  %v600 = vpop.f32.mrf.mxu0
  %v601 = vadd.f32 %v116, %v600
  %v602 = vpop.f32.mrf.mxu0
  %v603 = vpop.f32.mrf.mxu0
  %v604 = vadd.f32 %v116, %v603
  %v605 = vpop.f32.mrf.mxu0
  %606 = vmatprep.mubr.bf16.mxu0 %v321
  %607 = vmatmul.mubr.bf16.gmra.mxu0 %v320
  %v608 = vpop.f32.mrf.mxu0
  %v609 = vadd.f32 %v116, %v608
  %v610 = vpop.f32.mrf.mxu0
  %v611 = vpop.f32.mrf.mxu0
  %v612 = vadd.f32 %v116, %v611
  %v613 = vpop.f32.mrf.mxu0
  %614 = vmatprep.mubr.bf16.mxu0 %v323
  %615 = vmatmul.mubr.bf16.gmra.mxu0 %v322
  %v616 = vpop.f32.mrf.mxu0
  %v617 = vadd.f32 %v116, %v616
  %v618 = vpop.f32.mrf.mxu0
  %v619 = vpop.f32.mrf.mxu0
  %v620 = vadd.f32 %v116, %v619
  %v621 = vpop.f32.mrf.mxu0
  %622 = vmatprep.mubr.bf16.mxu0 %v325
  %623 = vmatmul.mubr.bf16.gmra.mxu0 %v324
  %v624 = vpop.f32.mrf.mxu0
  %v625 = vadd.f32 %v116, %v624
  %v626 = vpop.f32.mrf.mxu0
  %v627 = vpop.f32.mrf.mxu0
  %v628 = vadd.f32 %v116, %v627
  %v629 = vpop.f32.mrf.mxu0
  %630 = vmatprep.mubr.bf16.mxu0 %v327
  %631 = vmatmul.mubr.bf16.gmra.mxu0 %v326
  %v632 = vpop.f32.mrf.mxu0
  %v633 = vadd.f32 %v116, %v632
  %v634 = vpop.f32.mrf.mxu0
  %v635 = vpop.f32.mrf.mxu0
  %v636 = vadd.f32 %v116, %v635
  %v637 = vpop.f32.mrf.mxu0
  %638 = vmatprep.mubr.bf16.mxu0 %v329
  %639 = vmatmul.mubr.bf16.gmra.mxu0 %v328
  %v640 = vpop.f32.mrf.mxu0
  %v641 = vadd.f32 %v116, %v640
  %v642 = vpop.f32.mrf.mxu0
  %v643 = vpop.f32.mrf.mxu0
  %v644 = vadd.f32 %v116, %v643
  %v645 = vpop.f32.mrf.mxu0
  %646 = vmatprep.mubr.bf16.mxu0 %v331
  %647 = vmatmul.mubr.bf16.gmra.mxu0 %v330
  %v648 = vpop.f32.mrf.mxu0
  %v649 = vadd.f32 %v116, %v648
  %v650 = vpop.f32.mrf.mxu0
  %v651 = vpop.f32.mrf.mxu0
  %v652 = vadd.f32 %v116, %v651
  %v653 = vpop.f32.mrf.mxu0
  %654 = vmatprep.mubr.bf16.mxu0 %v333
  %655 = vmatmul.mubr.bf16.gmra.mxu0 %v332
  %v656 = vpop.f32.mrf.mxu0
  %v657 = vadd.f32 %v116, %v656
  %v658 = vpop.f32.mrf.mxu0
  %v659 = vpop.f32.mrf.mxu0
  %v660 = vadd.f32 %v116, %v659
  %v661 = vpop.f32.mrf.mxu0
  %662 = vmatprep.mubr.bf16.mxu0 %v335
  %663 = vmatmul.mubr.bf16.gmra.mxu0 %v334
  %v664 = vpop.f32.mrf.mxu0
  %v665 = vadd.f32 %v116, %v664
  %v666 = vpop.f32.mrf.mxu0
  %v667 = vpop.f32.mrf.mxu0
  %v668 = vadd.f32 %v116, %v667
  %v669 = vpop.f32.mrf.mxu0
  %670 = vmatprep.mubr.bf16.mxu0 %v337
  %671 = vmatmul.mubr.bf16.gmra.mxu0 %v336
  %v672 = vpop.f32.mrf.mxu0
  %v673 = vadd.f32 %v116, %v672
  %v674 = vpop.f32.mrf.mxu0
  %v675 = vpop.f32.mrf.mxu0
  %v676 = vadd.f32 %v116, %v675
  %v677 = vpop.f32.mrf.mxu0
  %678 = vmatprep.mubr.bf16.mxu0 %v339
  %679 = vmatmul.mubr.bf16.gmra.mxu0 %v338
  %v680 = vpop.f32.mrf.mxu0
  %v681 = vadd.f32 %v116, %v680
  %v682 = vpop.f32.mrf.mxu0
  %v683 = vpop.f32.mrf.mxu0
  %v684 = vadd.f32 %v116, %v683
  %v685 = vpop.f32.mrf.mxu0
  %686 = vmatprep.mubr.bf16.mxu0 %v341
  %687 = vmatmul.mubr.bf16.gmra.mxu0 %v340
  %v688 = vpop.f32.mrf.mxu0
  %v689 = vadd.f32 %v116, %v688
  %v690 = vpop.f32.mrf.mxu0
  %v691 = vpop.f32.mrf.mxu0
  %v692 = vadd.f32 %v116, %v691
  %v693 = vpop.f32.mrf.mxu0
  %694 = vmatprep.mubr.bf16.mxu0 %v343
  %695 = vmatmul.mubr.bf16.gmra.mxu0 %v342
  %v696 = vpop.f32.mrf.mxu0
  %v697 = vadd.f32 %v116, %v696
  %v698 = vpop.f32.mrf.mxu0
  %v699 = vpop.f32.mrf.mxu0
  %v700 = vadd.f32 %v116, %v699
  %v701 = vpop.f32.mrf.mxu0
  %702 = vmatprep.mubr.bf16.mxu0 %v345
  %703 = vmatmul.mubr.bf16.gmra.mxu0 %v344
  %v704 = vpop.f32.mrf.mxu0
  %v705 = vadd.f32 %v116, %v704
  %v706 = vpop.f32.mrf.mxu0
  %v707 = vpop.f32.mrf.mxu0
  %v708 = vadd.f32 %v116, %v707
  %v709 = vpop.f32.mrf.mxu0
  %710 = vmatprep.mubr.bf16.mxu0 %v347
  %711 = vmatmul.mubr.bf16.gmra.mxu0 %v346
  %v712 = vpop.f32.mrf.mxu0
  %v713 = vadd.f32 %v116, %v712
  %v714 = vpop.f32.mrf.mxu0
  %v715 = vpop.f32.mrf.mxu0
  %v716 = vadd.f32 %v116, %v715
  %v717 = vpop.f32.mrf.mxu0
  %718 = vmatprep.mubr.bf16.mxu0 %v349
  %719 = vmatmul.mubr.bf16.gmra.mxu0 %v348
  %v720 = vpop.f32.mrf.mxu0
  %v721 = vadd.f32 %v116, %v720
  %v722 = vpop.f32.mrf.mxu0
  %v723 = vpop.f32.mrf.mxu0
  %v724 = vadd.f32 %v116, %v723
  %v725 = vpop.f32.mrf.mxu0
  %726 = vmatprep.mubr.bf16.mxu0 %v351
  %727 = vmatmul.mubr.bf16.gmra.mxu0 %v350
  %v728 = vpop.f32.mrf.mxu0
  %v729 = vadd.f32 %v116, %v728
  %v730 = vpop.f32.mrf.mxu0
  %v731 = vpop.f32.mrf.mxu0
  %v732 = vadd.f32 %v116, %v731
  %v733 = vpop.f32.mrf.mxu0
  %734 = vmatprep.mubr.bf16.mxu0 %v353
  %735 = vmatmul.mubr.bf16.gmra.mxu0 %v352
  %v736 = vpop.f32.mrf.mxu0
  %v737 = vadd.f32 %v116, %v736
  %v738 = vpop.f32.mrf.mxu0
  %v739 = vpop.f32.mrf.mxu0
  %v740 = vadd.f32 %v116, %v739
  %v741 = vpop.f32.mrf.mxu0
  %742 = vmatprep.mubr.bf16.mxu0 %v355
  %743 = vmatmul.mubr.bf16.gmra.mxu0 %v354
  %v744 = vpop.f32.mrf.mxu0
  %v745 = vadd.f32 %v116, %v744
  %v746 = vpop.f32.mrf.mxu0
  %v747 = vpop.f32.mrf.mxu0
  %v748 = vadd.f32 %v116, %v747
  %v749 = vpop.f32.mrf.mxu0
  %750 = vmatprep.mubr.bf16.mxu0 %v357
  %751 = vmatmul.mubr.bf16.gmra.mxu0 %v356
  %v752 = vpop.f32.mrf.mxu0
  %v753 = vadd.f32 %v116, %v752
  %v754 = vpop.f32.mrf.mxu0
  %v755 = vpop.f32.mrf.mxu0
  %v756 = vadd.f32 %v116, %v755
  %v757 = vpop.f32.mrf.mxu0
  %758 = vmatprep.mubr.bf16.mxu0 %v359
  %759 = vmatmul.mubr.bf16.gmra.mxu0 %v358
  %v760 = vpop.f32.mrf.mxu0
  %v761 = vadd.f32 %v116, %v760
  %v762 = vpop.f32.mrf.mxu0
  %v763 = vpop.f32.mrf.mxu0
  %v764 = vadd.f32 %v116, %v763
  %v765 = vpop.f32.mrf.mxu0
  %766 = vmatprep.mubr.bf16.mxu0 %v361
  %767 = vmatmul.mubr.bf16.gmra.mxu0 %v360
  %v768 = vpop.f32.mrf.mxu0
  %v769 = vadd.f32 %v116, %v768
  %v770 = vpop.f32.mrf.mxu0
  %v771 = vpop.f32.mrf.mxu0
  %v772 = vadd.f32 %v116, %v771
  %v773 = vpop.f32.mrf.mxu0
  %774 = vmatprep.mubr.bf16.mxu0 %v363
  %775 = vmatmul.mubr.bf16.gmra.mxu0 %v362
  %v776 = vpop.f32.mrf.mxu0
  %v777 = vadd.f32 %v116, %v776
  %v778 = vpop.f32.mrf.mxu0
  %v779 = vpop.f32.mrf.mxu0
  %v780 = vadd.f32 %v116, %v779
  %v781 = vpop.f32.mrf.mxu0
  %782 = vmatprep.mubr.bf16.mxu0 %v365
  %783 = vmatmul.mubr.bf16.gmra.mxu0 %v364
  %v784 = vpop.f32.mrf.mxu0
  %v785 = vadd.f32 %v116, %v784
  %v786 = vpop.f32.mrf.mxu0
  %v787 = vpop.f32.mrf.mxu0
  %v788 = vadd.f32 %v116, %v787
  %v789 = vpop.f32.mrf.mxu0
  %790 = vmatprep.mubr.bf16.mxu0 %v367
  %791 = vmatmul.mubr.bf16.gmra.mxu0 %v366
  %v792 = vpop.f32.mrf.mxu0
  %v793 = vadd.f32 %v116, %v792
  %v794 = vpop.f32.mrf.mxu0
  %v795 = vpop.f32.mrf.mxu0
  %v796 = vadd.f32 %v116, %v795
  %v797 = vpop.f32.mrf.mxu0
  %798 = vmatprep.mubr.bf16.mxu0 %v369
  %799 = vmatmul.mubr.bf16.gmra.mxu0 %v368
  %v800 = vpop.f32.mrf.mxu0
  %v801 = vadd.f32 %v116, %v800
  %v802 = vpop.f32.mrf.mxu0
  %v803 = vpop.f32.mrf.mxu0
  %v804 = vadd.f32 %v116, %v803
  %v805 = vpop.f32.mrf.mxu0
  %806 = vmatprep.mubr.bf16.mxu0 %v371
  %807 = vmatmul.mubr.bf16.gmra.mxu0 %v370
  %v808 = vpop.f32.mrf.mxu0
  %v809 = vadd.f32 %v116, %v808
  %v810 = vpop.f32.mrf.mxu0
  %v811 = vpop.f32.mrf.mxu0
  %v812 = vadd.f32 %v116, %v811
  %v813 = vpop.f32.mrf.mxu0
  %814 = vmatprep.mubr.bf16.mxu0 %v373
  %815 = vmatmul.mubr.bf16.gmra.mxu0 %v372
  %v816 = vpop.f32.mrf.mxu0
  %v817 = vadd.f32 %v116, %v816
  %v818 = vpop.f32.mrf.mxu0
  %v819 = vpop.f32.mrf.mxu0
  %v820 = vadd.f32 %v116, %v819
  %v821 = vpop.f32.mrf.mxu0
  %822 = vdwg.mxu0
  %v823 = vmax.f32 %v569, 0.0
  %v824 = vmax.f32 %v572, 0.0
  %v825 = vmax.f32 %v577, 0.0
  %v826 = vmax.f32 %v580, 0.0
  %v827 = vmax.f32 %v585, 0.0
  %v828 = vmax.f32 %v588, 0.0
  %v829 = vmax.f32 %v593, 0.0
  %v830 = vmax.f32 %v596, 0.0
  %v831 = vmax.f32 %v601, 0.0
  %v832 = vmax.f32 %v604, 0.0
  %v833 = vmax.f32 %v609, 0.0
  %v834 = vmax.f32 %v612, 0.0
  %v835 = vmax.f32 %v617, 0.0
  %v836 = vmax.f32 %v620, 0.0
  %v837 = vmax.f32 %v625, 0.0
  %v838 = vmax.f32 %v628, 0.0
  %v839 = vmax.f32 %v633, 0.0
  %v840 = vmax.f32 %v636, 0.0
  %v841 = vmax.f32 %v641, 0.0
  %v842 = vmax.f32 %v644, 0.0
  %v843 = vmax.f32 %v649, 0.0
  %v844 = vmax.f32 %v652, 0.0
  %v845 = vmax.f32 %v657, 0.0
  %v846 = vmax.f32 %v660, 0.0
  %v847 = vmax.f32 %v665, 0.0
  %v848 = vmax.f32 %v668, 0.0
  %v849 = vmax.f32 %v673, 0.0
  %v850 = vmax.f32 %v676, 0.0
  %v851 = vmax.f32 %v681, 0.0
  %v852 = vmax.f32 %v684, 0.0
  %v853 = vmax.f32 %v689, 0.0
  %v854 = vmax.f32 %v692, 0.0
  %v855 = vmax.f32 %v697, 0.0
  %v856 = vmax.f32 %v700, 0.0
  %v857 = vmax.f32 %v705, 0.0
  %v858 = vmax.f32 %v708, 0.0
  %v859 = vmax.f32 %v713, 0.0
  %v860 = vmax.f32 %v716, 0.0
  %v861 = vmax.f32 %v721, 0.0
  %v862 = vmax.f32 %v724, 0.0
  %v863 = vmax.f32 %v729, 0.0
  %v864 = vmax.f32 %v732, 0.0
  %v865 = vmax.f32 %v737, 0.0
  %v866 = vmax.f32 %v740, 0.0
  %v867 = vmax.f32 %v745, 0.0
  %v868 = vmax.f32 %v748, 0.0
  %v869 = vmax.f32 %v753, 0.0
  %v870 = vmax.f32 %v756, 0.0
  %v871 = vmax.f32 %v761, 0.0
  %v872 = vmax.f32 %v764, 0.0
  %v873 = vmax.f32 %v769, 0.0
  %v874 = vmax.f32 %v772, 0.0
  %v875 = vmax.f32 %v777, 0.0
  %v876 = vmax.f32 %v780, 0.0
  %v877 = vmax.f32 %v785, 0.0
  %v878 = vmax.f32 %v788, 0.0
  %v879 = vmax.f32 %v793, 0.0
  %v880 = vmax.f32 %v796, 0.0
  %v881 = vmax.f32 %v801, 0.0
  %v882 = vmax.f32 %v804, 0.0
  %v883 = vmax.f32 %v809, 0.0
  %v884 = vmax.f32 %v812, 0.0
  %v885 = vmax.f32 %v817, 0.0
  %v886 = vmax.f32 %v820, 0.0
  %v887 = vpack.c.bf16 %v824, %v823
  %v888 = vpack.c.bf16 %v826, %v825
  %v889 = vpack.c.bf16 %v828, %v827
  %v890 = vpack.c.bf16 %v830, %v829
  %v891 = vpack.c.bf16 %v832, %v831
  %v892 = vpack.c.bf16 %v834, %v833
  %v893 = vpack.c.bf16 %v836, %v835
  %v894 = vpack.c.bf16 %v838, %v837
  %v895 = vpack.c.bf16 %v840, %v839
  %v896 = vpack.c.bf16 %v842, %v841
  %v897 = vpack.c.bf16 %v844, %v843
  %v898 = vpack.c.bf16 %v846, %v845
  %v899 = vpack.c.bf16 %v848, %v847
  %v900 = vpack.c.bf16 %v850, %v849
  %v901 = vpack.c.bf16 %v852, %v851
  %v902 = vpack.c.bf16 %v854, %v853
  %v903 = vpack.c.bf16 %v856, %v855
  %v904 = vpack.c.bf16 %v858, %v857
  %v905 = vpack.c.bf16 %v860, %v859
  %v906 = vpack.c.bf16 %v862, %v861
  %v907 = vpack.c.bf16 %v864, %v863
  %v908 = vpack.c.bf16 %v866, %v865
  %v909 = vpack.c.bf16 %v868, %v867
  %v910 = vpack.c.bf16 %v870, %v869
  %v911 = vpack.c.bf16 %v872, %v871
  %v912 = vpack.c.bf16 %v874, %v873
  %v913 = vpack.c.bf16 %v876, %v875
  %v914 = vpack.c.bf16 %v878, %v877
  %v915 = vpack.c.bf16 %v880, %v879
  %v916 = vpack.c.bf16 %v882, %v881
  %v917 = vpack.c.bf16 %v884, %v883
  %v918 = vpack.c.bf16 %v886, %v885
  %v951 = vunpack.c.l.b16 %v887
  %v952 = vunpack.c.h.b16 %v887
  %v953 = vunpack.c.l.b16 %v888
  %v954 = vunpack.c.h.b16 %v888
  %v955 = vunpack.c.l.b16 %v889
  %v956 = vunpack.c.h.b16 %v889
  %v957 = vunpack.c.l.b16 %v890
  %v958 = vunpack.c.h.b16 %v890
  %v959 = vunpack.c.l.b16 %v891
  %v960 = vunpack.c.h.b16 %v891
  %v961 = vunpack.c.l.b16 %v892
  %v962 = vunpack.c.h.b16 %v892
  %v963 = vunpack.c.l.b16 %v893
  %v964 = vunpack.c.h.b16 %v893
  %v965 = vunpack.c.l.b16 %v894
  %v966 = vunpack.c.h.b16 %v894
  %v967 = vunpack.c.l.b16 %v895
  %v968 = vunpack.c.h.b16 %v895
  %v969 = vunpack.c.l.b16 %v896
  %v970 = vunpack.c.h.b16 %v896
  %v971 = vunpack.c.l.b16 %v897
  %v972 = vunpack.c.h.b16 %v897
  %v973 = vunpack.c.l.b16 %v898
  %v974 = vunpack.c.h.b16 %v898
  %v975 = vunpack.c.l.b16 %v899
  %v976 = vunpack.c.h.b16 %v899
  %v977 = vunpack.c.l.b16 %v900
  %v978 = vunpack.c.h.b16 %v900
  %v979 = vunpack.c.l.b16 %v901
  %v980 = vunpack.c.h.b16 %v901
  %v981 = vunpack.c.l.b16 %v902
  %v982 = vunpack.c.h.b16 %v902
  %v983 = vunpack.c.l.b16 %v903
  %v984 = vunpack.c.h.b16 %v903
  %v985 = vunpack.c.l.b16 %v904
  %v986 = vunpack.c.h.b16 %v904
  %v987 = vunpack.c.l.b16 %v905
  %v988 = vunpack.c.h.b16 %v905
  %v989 = vunpack.c.l.b16 %v906
  %v990 = vunpack.c.h.b16 %v906
  %v991 = vunpack.c.l.b16 %v907
  %v992 = vunpack.c.h.b16 %v907
  %v993 = vunpack.c.l.b16 %v908
  %v994 = vunpack.c.h.b16 %v908
  %v995 = vunpack.c.l.b16 %v909
  %v996 = vunpack.c.h.b16 %v909
  %v997 = vunpack.c.l.b16 %v910
  %v998 = vunpack.c.h.b16 %v910
  %v999 = vunpack.c.l.b16 %v911
  %v1000 = vunpack.c.h.b16 %v911
  %v1001 = vunpack.c.l.b16 %v912
  %v1002 = vunpack.c.h.b16 %v912
  %v1003 = vunpack.c.l.b16 %v913
  %v1004 = vunpack.c.h.b16 %v913
  %v1005 = vunpack.c.l.b16 %v914
  %v1006 = vunpack.c.h.b16 %v914
  %v1007 = vunpack.c.l.b16 %v915
  %v1008 = vunpack.c.h.b16 %v915
  %v1009 = vunpack.c.l.b16 %v916
  %v1010 = vunpack.c.h.b16 %v916
  %v1011 = vunpack.c.l.b16 %v917
  %v1012 = vunpack.c.h.b16 %v917
  %v1013 = vunpack.c.l.b16 %v918
  %v1014 = vunpack.c.h.b16 %v918
  %v1015 = vpack.c.b16 %v951, %v951
  %v1016 = vpack.c.b16 %v952, %v952
  %v1017 = vpack.c.b16 %v953, %v953
  %v1018 = vpack.c.b16 %v954, %v954
  %v1019 = vpack.c.b16 %v955, %v955
  %v1020 = vpack.c.b16 %v956, %v956
  %v1021 = vpack.c.b16 %v957, %v957
  %v1022 = vpack.c.b16 %v958, %v958
  %v1023 = vpack.c.b16 %v959, %v959
  %v1024 = vpack.c.b16 %v960, %v960
  %v1025 = vpack.c.b16 %v961, %v961
  %v1026 = vpack.c.b16 %v962, %v962
  %v1027 = vpack.c.b16 %v963, %v963
  %v1028 = vpack.c.b16 %v964, %v964
  %v1029 = vpack.c.b16 %v965, %v965
  %v1030 = vpack.c.b16 %v966, %v966
  %v1031 = vpack.c.b16 %v967, %v967
  %v1032 = vpack.c.b16 %v968, %v968
  %v1033 = vpack.c.b16 %v969, %v969
  %v1034 = vpack.c.b16 %v970, %v970
  %v1035 = vpack.c.b16 %v971, %v971
  %v1036 = vpack.c.b16 %v972, %v972
  %v1037 = vpack.c.b16 %v973, %v973
  %v1038 = vpack.c.b16 %v974, %v974
  %v1039 = vpack.c.b16 %v975, %v975
  %v1040 = vpack.c.b16 %v976, %v976
  %v1041 = vpack.c.b16 %v977, %v977
  %v1042 = vpack.c.b16 %v978, %v978
  %v1043 = vpack.c.b16 %v979, %v979
  %v1044 = vpack.c.b16 %v980, %v980
  %v1045 = vpack.c.b16 %v981, %v981
  %v1046 = vpack.c.b16 %v982, %v982
  %v1047 = vpack.c.b16 %v983, %v983
  %v1048 = vpack.c.b16 %v984, %v984
  %v1049 = vpack.c.b16 %v985, %v985
  %v1050 = vpack.c.b16 %v986, %v986
  %v1051 = vpack.c.b16 %v987, %v987
  %v1052 = vpack.c.b16 %v988, %v988
  %v1053 = vpack.c.b16 %v989, %v989
  %v1054 = vpack.c.b16 %v990, %v990
  %v1055 = vpack.c.b16 %v991, %v991
  %v1056 = vpack.c.b16 %v992, %v992
  %v1057 = vpack.c.b16 %v993, %v993
  %v1058 = vpack.c.b16 %v994, %v994
  %v1059 = vpack.c.b16 %v995, %v995
  %v1060 = vpack.c.b16 %v996, %v996
  %v1061 = vpack.c.b16 %v997, %v997
  %v1062 = vpack.c.b16 %v998, %v998
  %v1063 = vpack.c.b16 %v999, %v999
  %v1064 = vpack.c.b16 %v1000, %v1000
  %v1065 = vpack.c.b16 %v1001, %v1001
  %v1066 = vpack.c.b16 %v1002, %v1002
  %v1067 = vpack.c.b16 %v1003, %v1003
  %v1068 = vpack.c.b16 %v1004, %v1004
  %v1069 = vpack.c.b16 %v1005, %v1005
  %v1070 = vpack.c.b16 %v1006, %v1006
  %v1071 = vpack.c.b16 %v1007, %v1007
  %v1072 = vpack.c.b16 %v1008, %v1008
  %v1073 = vpack.c.b16 %v1009, %v1009
  %v1074 = vpack.c.b16 %v1010, %v1010
  %v1075 = vpack.c.b16 %v1011, %v1011
  %v1076 = vpack.c.b16 %v1012, %v1012
  %v1077 = vpack.c.b16 %v1013, %v1013
  %v1078 = vpack.c.b16 %v1014, %v1014
  %1143 = vst [vmem:[%s3] sm:$0xf] %v1015
  %1144 = vst [vmem:[%s3 + $0x4] sm:$0xf] %v1016
  %1145 = vst [vmem:[%s3 + $0x8] sm:$0xf] %v1017
  %1146 = vst [vmem:[%s3 + $0xc] sm:$0xf] %v1018
  %1147 = vst [vmem:[%s3 + $0x10] sm:$0xf] %v1019
  %1148 = vst [vmem:[%s3 + $0x14] sm:$0xf] %v1020
  %1149 = vst [vmem:[%s3 + $0x18] sm:$0xf] %v1021
  %1150 = vst [vmem:[%s3 + $0x1c] sm:$0xf] %v1022
  %1151 = vst [vmem:[%s3 + $0x20] sm:$0xf] %v1023
  %1152 = vst [vmem:[%s3 + $0x24] sm:$0xf] %v1024
  %1153 = vst [vmem:[%s3 + $0x28] sm:$0xf] %v1025
  %1154 = vst [vmem:[%s3 + $0x2c] sm:$0xf] %v1026
  %1155 = vst [vmem:[%s3 + $0x30] sm:$0xf] %v1027
  %1156 = vst [vmem:[%s3 + $0x34] sm:$0xf] %v1028
  %1157 = vst [vmem:[%s3 + $0x38] sm:$0xf] %v1029
  %1158 = vst [vmem:[%s3 + $0x3c] sm:$0xf] %v1030
  %1159 = vst [vmem:[%s3 + $0x40] sm:$0xf] %v1031
  %1160 = vst [vmem:[%s3 + $0x44] sm:$0xf] %v1032
  %1161 = vst [vmem:[%s3 + $0x48] sm:$0xf] %v1033
  %1162 = vst [vmem:[%s3 + $0x4c] sm:$0xf] %v1034
  %1163 = vst [vmem:[%s3 + $0x50] sm:$0xf] %v1035
  %1164 = vst [vmem:[%s3 + $0x54] sm:$0xf] %v1036
  %1165 = vst [vmem:[%s3 + $0x58] sm:$0xf] %v1037
  %1166 = vst [vmem:[%s3 + $0x5c] sm:$0xf] %v1038
  %1167 = vst [vmem:[%s3 + $0x60] sm:$0xf] %v1039
  %1168 = vst [vmem:[%s3 + $0x64] sm:$0xf] %v1040
  %1169 = vst [vmem:[%s3 + $0x68] sm:$0xf] %v1041
  %1170 = vst [vmem:[%s3 + $0x6c] sm:$0xf] %v1042
  %1171 = vst [vmem:[%s3 + $0x70] sm:$0xf] %v1043
  %1172 = vst [vmem:[%s3 + $0x74] sm:$0xf] %v1044
  %1173 = vst [vmem:[%s3 + $0x78] sm:$0xf] %v1045
  %1174 = vst [vmem:[%s3 + $0x7c] sm:$0xf] %v1046
  %1175 = vst [vmem:[%s3 + $0x80] sm:$0xf] %v1047
  %1176 = vst [vmem:[%s3 + $0x84] sm:$0xf] %v1048
  %1177 = vst [vmem:[%s3 + $0x88] sm:$0xf] %v1049
  %1178 = vst [vmem:[%s3 + $0x8c] sm:$0xf] %v1050
  %1179 = vst [vmem:[%s3 + $0x90] sm:$0xf] %v1051
  %1180 = vst [vmem:[%s3 + $0x94] sm:$0xf] %v1052
  %1181 = vst [vmem:[%s3 + $0x98] sm:$0xf] %v1053
  %1182 = vst [vmem:[%s3 + $0x9c] sm:$0xf] %v1054
  %1183 = vst [vmem:[%s3 + $0xa0] sm:$0xf] %v1055
  %1184 = vst [vmem:[%s3 + $0xa4] sm:$0xf] %v1056
  %1185 = vst [vmem:[%s3 + $0xa8] sm:$0xf] %v1057
  %1186 = vst [vmem:[%s3 + $0xac] sm:$0xf] %v1058
  %1187 = vst [vmem:[%s3 + $0xb0] sm:$0xf] %v1059
  %1188 = vst [vmem:[%s3 + $0xb4] sm:$0xf] %v1060
  %1189 = vst [vmem:[%s3 + $0xb8] sm:$0xf] %v1061
  %1190 = vst [vmem:[%s3 + $0xbc] sm:$0xf] %v1062
  %1191 = vst [vmem:[%s3 + $0xc0] sm:$0xf] %v1063
  %1192 = vst [vmem:[%s3 + $0xc4] sm:$0xf] %v1064
  %1193 = vst [vmem:[%s3 + $0xc8] sm:$0xf] %v1065
  %1194 = vst [vmem:[%s3 + $0xcc] sm:$0xf] %v1066
  %1195 = vst [vmem:[%s3 + $0xd0] sm:$0xf] %v1067
  %1196 = vst [vmem:[%s3 + $0xd4] sm:$0xf] %v1068
  %1197 = vst [vmem:[%s3 + $0xd8] sm:$0xf] %v1069
  %1198 = vst [vmem:[%s3 + $0xdc] sm:$0xf] %v1070
  %1199 = vst [vmem:[%s3 + $0xe0] sm:$0xf] %v1071
  %1200 = vst [vmem:[%s3 + $0xe4] sm:$0xf] %v1072
  %1201 = vst [vmem:[%s3 + $0xe8] sm:$0xf] %v1073
  %1202 = vst [vmem:[%s3 + $0xec] sm:$0xf] %v1074
  %1203 = vst [vmem:[%s3 + $0xf0] sm:$0xf] %v1075
  %1204 = vst [vmem:[%s3 + $0xf4] sm:$0xf] %v1076
  %1205 = vst [vmem:[%s3 + $0xf8] sm:$0xf] %v1077
  %1206 = vst [vmem:[%s3 + $0xfc] sm:$0xf] %v1078
  // Predicated region
  $region14: #{stem_fwd.2} parent=0 // pred_check
    _
  $region15: #{stem_fwd.2} parent=0 // pred_check_branch
    %1208 = sbr.rel (0) target = $region17
  $region16: #{stem_fwd.2} parent=0 // pred_region
    _
  $region17: #{stem_fwd.2} parent=0 // pred_fallthru
    _
  // Predicated region
  $region18: #{stem_fwd.2} parent=0 // pred_check
    _
  $region19: #{stem_fwd.2} parent=0 // pred_check_branch
    %1210 = sbr.rel (0) target = $region21
  $region20: #{stem_fwd.2} parent=0 // pred_region
    _
  $region21: #{stem_fwd.2} parent=0 // pred_fallthru
    _

// kernel: stem_fwd.3
$region0: #{stem_fwd.3}
  #allocation0 [shape = 'u32[]', space=smem, size = 0x4, offset = 0x4, fixed_abs, tag = 'smem constant byte address 0x4 - core index']
  #allocation1 [shape = 'u32[144,128]{1,0:T(1,128)}', space=vmem, size = 0x12000, scoped, tag = 'internal scratch']
  %s0 = inlined_call_operand.vmem [shape: bf16[9,128,64], index: 0, kind: input, shape index: {}]
  %s1 = inlined_call_operand.hbm [shape: bf16[128,64], index: 1, kind: output, shape index: {}]
  %s2 = sld [smem:[#allocation0]]
  $region14: #{stem_fwd.3} parent=0
    _
  %s4 = ssub.s32 1, %s2
  %s5 = scalar_select 0, %s4, %s2
  $region1: #{stem_fwd.3} parent=0
    #allocation2 [shape = 'u8[32768]{0}', space=vmem, size = 0x8000, scoped, tag = 'output window, operand 0, single buffered']
    #allocation3 [shape = 's32[1]{0}', space=sflag, size = 0x4, scoped, tag = 'scoped memory for stem_fwd.3']
    %6 = vsyncpa [#allocation3], 0
    // Predicated region
    $region2: #{stem_fwd.3} parent=1 // pred_check
      _
    $region3: #{stem_fwd.3} parent=1 // pred_check_branch
      %8 = sbr.rel (0) target = $region5
    $region4: #{stem_fwd.3} parent=1 // pred_region
      _
    $region5: #{stem_fwd.3} parent=1 // pred_fallthru
      _
    %v9 = vld [vmem:[%s0] sm:$0xf]
    %v10 = vld [vmem:[%s0 + $0x4] sm:$0xf]
    %v11 = vld [vmem:[%s0 + $0x8] sm:$0xf]
    %v12 = vld [vmem:[%s0 + $0xc] sm:$0xf]
    %v13 = vld [vmem:[%s0 + $0x10] sm:$0xf]
    %v14 = vld [vmem:[%s0 + $0x14] sm:$0xf]
    %v15 = vld [vmem:[%s0 + $0x18] sm:$0xf]
    %v16 = vld [vmem:[%s0 + $0x1c] sm:$0xf]
    %v17 = vld [vmem:[%s0 + $0x20] sm:$0xf]
    %v18 = vld [vmem:[%s0 + $0x24] sm:$0xf]
    %v19 = vld [vmem:[%s0 + $0x28] sm:$0xf]
    %v20 = vld [vmem:[%s0 + $0x2c] sm:$0xf]
    %v21 = vld [vmem:[%s0 + $0x30] sm:$0xf]
    %v22 = vld [vmem:[%s0 + $0x34] sm:$0xf]
    %v23 = vld [vmem:[%s0 + $0x38] sm:$0xf]
    %v24 = vld [vmem:[%s0 + $0x3c] sm:$0xf]
    %s25 = scalar_lea.vmem %s0, 64
    %v26 = vld [vmem:[%s25] sm:$0xf]
    %v27 = vld [vmem:[%s25 + $0x4] sm:$0xf]
    %v28 = vld [vmem:[%s25 + $0x8] sm:$0xf]
    %v29 = vld [vmem:[%s25 + $0xc] sm:$0xf]
    %v30 = vld [vmem:[%s25 + $0x10] sm:$0xf]
    %v31 = vld [vmem:[%s25 + $0x14] sm:$0xf]
    %v32 = vld [vmem:[%s25 + $0x18] sm:$0xf]
    %v33 = vld [vmem:[%s25 + $0x1c] sm:$0xf]
    %v34 = vld [vmem:[%s25 + $0x20] sm:$0xf]
    %v35 = vld [vmem:[%s25 + $0x24] sm:$0xf]
    %v36 = vld [vmem:[%s25 + $0x28] sm:$0xf]
    %v37 = vld [vmem:[%s25 + $0x2c] sm:$0xf]
    %v38 = vld [vmem:[%s25 + $0x30] sm:$0xf]
    %v39 = vld [vmem:[%s25 + $0x34] sm:$0xf]
    %v40 = vld [vmem:[%s25 + $0x38] sm:$0xf]
    %v41 = vld [vmem:[%s25 + $0x3c] sm:$0xf]
    %v42 = vmax.bf16 %v9, %v26
    %v43 = vmax.bf16 %v10, %v27
    %v44 = vmax.bf16 %v11, %v28
    %v45 = vmax.bf16 %v12, %v29
    %v46 = vmax.bf16 %v13, %v30
    %v47 = vmax.bf16 %v14, %v31
    %v48 = vmax.bf16 %v15, %v32
    %v49 = vmax.bf16 %v16, %v33
    %v50 = vmax.bf16 %v17, %v34
    %v51 = vmax.bf16 %v18, %v35
    %v52 = vmax.bf16 %v19, %v36
    %v53 = vmax.bf16 %v20, %v37
    %v54 = vmax.bf16 %v21, %v38
    %v55 = vmax.bf16 %v22, %v39
    %v56 = vmax.bf16 %v23, %v40
    %v57 = vmax.bf16 %v24, %v41
    %s58 = scalar_lea.vmem %s0, 128
    %v59 = vld [vmem:[%s58] sm:$0xf]
    %v60 = vld [vmem:[%s58 + $0x4] sm:$0xf]
    %v61 = vld [vmem:[%s58 + $0x8] sm:$0xf]
    %v62 = vld [vmem:[%s58 + $0xc] sm:$0xf]
    %v63 = vld [vmem:[%s58 + $0x10] sm:$0xf]
    %v64 = vld [vmem:[%s58 + $0x14] sm:$0xf]
    %v65 = vld [vmem:[%s58 + $0x18] sm:$0xf]
    %v66 = vld [vmem:[%s58 + $0x1c] sm:$0xf]
    %v67 = vld [vmem:[%s58 + $0x20] sm:$0xf]
    %v68 = vld [vmem:[%s58 + $0x24] sm:$0xf]
    %v69 = vld [vmem:[%s58 + $0x28] sm:$0xf]
    %v70 = vld [vmem:[%s58 + $0x2c] sm:$0xf]
    %v71 = vld [vmem:[%s58 + $0x30] sm:$0xf]
    %v72 = vld [vmem:[%s58 + $0x34] sm:$0xf]
    %v73 = vld [vmem:[%s58 + $0x38] sm:$0xf]
    %v74 = vld [vmem:[%s58 + $0x3c] sm:$0xf]
    %v75 = vmax.bf16 %v42, %v59
    %v76 = vmax.bf16 %v43, %v60
    %v77 = vmax.bf16 %v44, %v61
    %v78 = vmax.bf16 %v45, %v62
    %v79 = vmax.bf16 %v46, %v63
    %v80 = vmax.bf16 %v47, %v64
    %v81 = vmax.bf16 %v48, %v65
    %v82 = vmax.bf16 %v49, %v66
    %v83 = vmax.bf16 %v50, %v67
    %v84 = vmax.bf16 %v51, %v68
    %v85 = vmax.bf16 %v52, %v69
    %v86 = vmax.bf16 %v53, %v70
    %v87 = vmax.bf16 %v54, %v71
    %v88 = vmax.bf16 %v55, %v72
    %v89 = vmax.bf16 %v56, %v73
    %v90 = vmax.bf16 %v57, %v74
    %s91 = scalar_lea.vmem %s0, 192
    %v92 = vld [vmem:[%s91] sm:$0xf]
    %v93 = vld [vmem:[%s91 + $0x4] sm:$0xf]
    %v94 = vld [vmem:[%s91 + $0x8] sm:$0xf]
    %v95 = vld [vmem:[%s91 + $0xc] sm:$0xf]
    %v96 = vld [vmem:[%s91 + $0x10] sm:$0xf]
    %v97 = vld [vmem:[%s91 + $0x14] sm:$0xf]
    %v98 = vld [vmem:[%s91 + $0x18] sm:$0xf]
    %v99 = vld [vmem:[%s91 + $0x1c] sm:$0xf]
    %v100 = vld [vmem:[%s91 + $0x20] sm:$0xf]
    %v101 = vld [vmem:[%s91 + $0x24] sm:$0xf]
    %v102 = vld [vmem:[%s91 + $0x28] sm:$0xf]
    %v103 = vld [vmem:[%s91 + $0x2c] sm:$0xf]
    %v104 = vld [vmem:[%s91 + $0x30] sm:$0xf]
    %v105 = vld [vmem:[%s91 + $0x34] sm:$0xf]
    %v106 = vld [vmem:[%s91 + $0x38] sm:$0xf]
    %v107 = vld [vmem:[%s91 + $0x3c] sm:$0xf]
    %v108 = vmax.bf16 %v75, %v92
    %v109 = vmax.bf16 %v76, %v93
    %v110 = vmax.bf16 %v77, %v94
    %v111 = vmax.bf16 %v78, %v95
    %v112 = vmax.bf16 %v79, %v96
    %v113 = vmax.bf16 %v80, %v97
    %v114 = vmax.bf16 %v81, %v98
    %v115 = vmax.bf16 %v82, %v99
    %v116 = vmax.bf16 %v83, %v100
    %v117 = vmax.bf16 %v84, %v101
    %v118 = vmax.bf16 %v85, %v102
    %v119 = vmax.bf16 %v86, %v103
    %v120 = vmax.bf16 %v87, %v104
    %v121 = vmax.bf16 %v88, %v105
    %v122 = vmax.bf16 %v89, %v106
    %v123 = vmax.bf16 %v90, %v107
    %s124 = scalar_lea.vmem %s0, 256
    %v125 = vld [vmem:[%s124] sm:$0xf]
    %v126 = vld [vmem:[%s124 + $0x4] sm:$0xf]
    %v127 = vld [vmem:[%s124 + $0x8] sm:$0xf]
    %v128 = vld [vmem:[%s124 + $0xc] sm:$0xf]
    %v129 = vld [vmem:[%s124 + $0x10] sm:$0xf]
    %v130 = vld [vmem:[%s124 + $0x14] sm:$0xf]
    %v131 = vld [vmem:[%s124 + $0x18] sm:$0xf]
    %v132 = vld [vmem:[%s124 + $0x1c] sm:$0xf]
    %v133 = vld [vmem:[%s124 + $0x20] sm:$0xf]
    %v134 = vld [vmem:[%s124 + $0x24] sm:$0xf]
    %v135 = vld [vmem:[%s124 + $0x28] sm:$0xf]
    %v136 = vld [vmem:[%s124 + $0x2c] sm:$0xf]
    %v137 = vld [vmem:[%s124 + $0x30] sm:$0xf]
    %v138 = vld [vmem:[%s124 + $0x34] sm:$0xf]
    %v139 = vld [vmem:[%s124 + $0x38] sm:$0xf]
    %v140 = vld [vmem:[%s124 + $0x3c] sm:$0xf]
    %v141 = vmax.bf16 %v108, %v125
    %v142 = vmax.bf16 %v109, %v126
    %v143 = vmax.bf16 %v110, %v127
    %v144 = vmax.bf16 %v111, %v128
    %v145 = vmax.bf16 %v112, %v129
    %v146 = vmax.bf16 %v113, %v130
    %v147 = vmax.bf16 %v114, %v131
    %v148 = vmax.bf16 %v115, %v132
    %v149 = vmax.bf16 %v116, %v133
    %v150 = vmax.bf16 %v117, %v134
    %v151 = vmax.bf16 %v118, %v135
    %v152 = vmax.bf16 %v119, %v136
    %v153 = vmax.bf16 %v120, %v137
    %v154 = vmax.bf16 %v121, %v138
    %v155 = vmax.bf16 %v122, %v139
    %v156 = vmax.bf16 %v123, %v140
    %s157 = scalar_lea.vmem %s0, 320
    %v158 = vld [vmem:[%s157] sm:$0xf]
    %v159 = vld [vmem:[%s157 + $0x4] sm:$0xf]
    %v160 = vld [vmem:[%s157 + $0x8] sm:$0xf]
    %v161 = vld [vmem:[%s157 + $0xc] sm:$0xf]
    %v162 = vld [vmem:[%s157 + $0x10] sm:$0xf]
    %v163 = vld [vmem:[%s157 + $0x14] sm:$0xf]
    %v164 = vld [vmem:[%s157 + $0x18] sm:$0xf]
    %v165 = vld [vmem:[%s157 + $0x1c] sm:$0xf]
    %v166 = vld [vmem:[%s157 + $0x20] sm:$0xf]
    %v167 = vld [vmem:[%s157 + $0x24] sm:$0xf]
    %v168 = vld [vmem:[%s157 + $0x28] sm:$0xf]
    %v169 = vld [vmem:[%s157 + $0x2c] sm:$0xf]
    %v170 = vld [vmem:[%s157 + $0x30] sm:$0xf]
    %v171 = vld [vmem:[%s157 + $0x34] sm:$0xf]
    %v172 = vld [vmem:[%s157 + $0x38] sm:$0xf]
    %v173 = vld [vmem:[%s157 + $0x3c] sm:$0xf]
    %v174 = vmax.bf16 %v141, %v158
    %v175 = vmax.bf16 %v142, %v159
    %v176 = vmax.bf16 %v143, %v160
    %v177 = vmax.bf16 %v144, %v161
    %v178 = vmax.bf16 %v145, %v162
    %v179 = vmax.bf16 %v146, %v163
    %v180 = vmax.bf16 %v147, %v164
    %v181 = vmax.bf16 %v148, %v165
    %v182 = vmax.bf16 %v149, %v166
    %v183 = vmax.bf16 %v150, %v167
    %v184 = vmax.bf16 %v151, %v168
    %v185 = vmax.bf16 %v152, %v169
    %v186 = vmax.bf16 %v153, %v170
    %v187 = vmax.bf16 %v154, %v171
    %v188 = vmax.bf16 %v155, %v172
    %v189 = vmax.bf16 %v156, %v173
    %s190 = scalar_lea.vmem %s0, 384
    %v191 = vld [vmem:[%s190] sm:$0xf]
    %v192 = vld [vmem:[%s190 + $0x4] sm:$0xf]
    %v193 = vld [vmem:[%s190 + $0x8] sm:$0xf]
    %v194 = vld [vmem:[%s190 + $0xc] sm:$0xf]
    %v195 = vld [vmem:[%s190 + $0x10] sm:$0xf]
    %v196 = vld [vmem:[%s190 + $0x14] sm:$0xf]
    %v197 = vld [vmem:[%s190 + $0x18] sm:$0xf]
    %v198 = vld [vmem:[%s190 + $0x1c] sm:$0xf]
    %v199 = vld [vmem:[%s190 + $0x20] sm:$0xf]
    %v200 = vld [vmem:[%s190 + $0x24] sm:$0xf]
    %v201 = vld [vmem:[%s190 + $0x28] sm:$0xf]
    %v202 = vld [vmem:[%s190 + $0x2c] sm:$0xf]
    %v203 = vld [vmem:[%s190 + $0x30] sm:$0xf]
    %v204 = vld [vmem:[%s190 + $0x34] sm:$0xf]
    %v205 = vld [vmem:[%s190 + $0x38] sm:$0xf]
    %v206 = vld [vmem:[%s190 + $0x3c] sm:$0xf]
    %v207 = vmax.bf16 %v174, %v191
    %v208 = vmax.bf16 %v175, %v192
    %v209 = vmax.bf16 %v176, %v193
    %v210 = vmax.bf16 %v177, %v194
    %v211 = vmax.bf16 %v178, %v195
    %v212 = vmax.bf16 %v179, %v196
    %v213 = vmax.bf16 %v180, %v197
    %v214 = vmax.bf16 %v181, %v198
    %v215 = vmax.bf16 %v182, %v199
    %v216 = vmax.bf16 %v183, %v200
    %v217 = vmax.bf16 %v184, %v201
    %v218 = vmax.bf16 %v185, %v202
    %v219 = vmax.bf16 %v186, %v203
    %v220 = vmax.bf16 %v187, %v204
    %v221 = vmax.bf16 %v188, %v205
    %v222 = vmax.bf16 %v189, %v206
    %s223 = scalar_lea.vmem %s0, 448
    %v224 = vld [vmem:[%s223] sm:$0xf]
    %v225 = vld [vmem:[%s223 + $0x4] sm:$0xf]
    %v226 = vld [vmem:[%s223 + $0x8] sm:$0xf]
    %v227 = vld [vmem:[%s223 + $0xc] sm:$0xf]
    %v228 = vld [vmem:[%s223 + $0x10] sm:$0xf]
    %v229 = vld [vmem:[%s223 + $0x14] sm:$0xf]
    %v230 = vld [vmem:[%s223 + $0x18] sm:$0xf]
    %v231 = vld [vmem:[%s223 + $0x1c] sm:$0xf]
    %v232 = vld [vmem:[%s223 + $0x20] sm:$0xf]
    %v233 = vld [vmem:[%s223 + $0x24] sm:$0xf]
    %v234 = vld [vmem:[%s223 + $0x28] sm:$0xf]
    %v235 = vld [vmem:[%s223 + $0x2c] sm:$0xf]
    %v236 = vld [vmem:[%s223 + $0x30] sm:$0xf]
    %v237 = vld [vmem:[%s223 + $0x34] sm:$0xf]
    %v238 = vld [vmem:[%s223 + $0x38] sm:$0xf]
    %v239 = vld [vmem:[%s223 + $0x3c] sm:$0xf]
    %v240 = vmax.bf16 %v207, %v224
    %v241 = vmax.bf16 %v208, %v225
    %v242 = vmax.bf16 %v209, %v226
    %v243 = vmax.bf16 %v210, %v227
    %v244 = vmax.bf16 %v211, %v228
    %v245 = vmax.bf16 %v212, %v229
    %v246 = vmax.bf16 %v213, %v230
    %v247 = vmax.bf16 %v214, %v231
    %v248 = vmax.bf16 %v215, %v232
    %v249 = vmax.bf16 %v216, %v233
    %v250 = vmax.bf16 %v217, %v234
    %v251 = vmax.bf16 %v218, %v235
    %v252 = vmax.bf16 %v219, %v236
    %v253 = vmax.bf16 %v220, %v237
    %v254 = vmax.bf16 %v221, %v238
    %v255 = vmax.bf16 %v222, %v239
    %s256 = scalar_lea.vmem %s0, 512
    %v257 = vld [vmem:[%s256] sm:$0xf]
    %v258 = vld [vmem:[%s256 + $0x4] sm:$0xf]
    %v259 = vld [vmem:[%s256 + $0x8] sm:$0xf]
    %v260 = vld [vmem:[%s256 + $0xc] sm:$0xf]
    %v261 = vld [vmem:[%s256 + $0x10] sm:$0xf]
    %v262 = vld [vmem:[%s256 + $0x14] sm:$0xf]
    %v263 = vld [vmem:[%s256 + $0x18] sm:$0xf]
    %v264 = vld [vmem:[%s256 + $0x1c] sm:$0xf]
    %v265 = vld [vmem:[%s256 + $0x20] sm:$0xf]
    %v266 = vld [vmem:[%s256 + $0x24] sm:$0xf]
    %v267 = vld [vmem:[%s256 + $0x28] sm:$0xf]
    %v268 = vld [vmem:[%s256 + $0x2c] sm:$0xf]
    %v269 = vld [vmem:[%s256 + $0x30] sm:$0xf]
    %v270 = vld [vmem:[%s256 + $0x34] sm:$0xf]
    %v271 = vld [vmem:[%s256 + $0x38] sm:$0xf]
    %v272 = vld [vmem:[%s256 + $0x3c] sm:$0xf]
    %v273 = vmax.bf16 %v240, %v257
    %v274 = vmax.bf16 %v241, %v258
    %v275 = vmax.bf16 %v242, %v259
    %v276 = vmax.bf16 %v243, %v260
    %v277 = vmax.bf16 %v244, %v261
    %v278 = vmax.bf16 %v245, %v262
    %v279 = vmax.bf16 %v246, %v263
    %v280 = vmax.bf16 %v247, %v264
    %v281 = vmax.bf16 %v248, %v265
    %v282 = vmax.bf16 %v249, %v266
    %v283 = vmax.bf16 %v250, %v267
    %v284 = vmax.bf16 %v251, %v268
    %v285 = vmax.bf16 %v252, %v269
    %v286 = vmax.bf16 %v253, %v270
    %v287 = vmax.bf16 %v254, %v271
    %v288 = vmax.bf16 %v255, %v272
    %vm289 = vcmask 519168
    %290 = vst.msk [vmem:[#allocation2] sm:$0xf] %vm289, %v273
    %291 = vst.msk [vmem:[#allocation2 + $0x4] sm:$0xf] %vm289, %v274
    %292 = vst.msk [vmem:[#allocation2 + $0x8] sm:$0xf] %vm289, %v275
    %293 = vst.msk [vmem:[#allocation2 + $0xc] sm:$0xf] %vm289, %v276
    %294 = vst.msk [vmem:[#allocation2 + $0x10] sm:$0xf] %vm289, %v277
    %295 = vst.msk [vmem:[#allocation2 + $0x14] sm:$0xf] %vm289, %v278
    %296 = vst.msk [vmem:[#allocation2 + $0x18] sm:$0xf] %vm289, %v279
    %297 = vst.msk [vmem:[#allocation2 + $0x1c] sm:$0xf] %vm289, %v280
    %298 = vst.msk [vmem:[#allocation2 + $0x20] sm:$0xf] %vm289, %v281
    %299 = vst.msk [vmem:[#allocation2 + $0x24] sm:$0xf] %vm289, %v282
    %300 = vst.msk [vmem:[#allocation2 + $0x28] sm:$0xf] %vm289, %v283
    %301 = vst.msk [vmem:[#allocation2 + $0x2c] sm:$0xf] %vm289, %v284
    %302 = vst.msk [vmem:[#allocation2 + $0x30] sm:$0xf] %vm289, %v285
    %303 = vst.msk [vmem:[#allocation2 + $0x34] sm:$0xf] %vm289, %v286
    %304 = vst.msk [vmem:[#allocation2 + $0x38] sm:$0xf] %vm289, %v287
    %305 = vst.msk [vmem:[#allocation2 + $0x3c] sm:$0xf] %vm289, %v288
    // Predicated region
    $region6: #{stem_fwd.3} parent=1 // pred_check
      _
    $region7: #{stem_fwd.3} parent=1 // pred_check_branch
      %307 = sbr.rel (0) target = $region9
    $region8: #{stem_fwd.3} parent=1 // pred_region
      %s309 = ssub.s32 1024, 1024
      %310 = vsyncadd [#allocation3], %s309
      %s311 = sshll.u32 [#allocation2], 4
      %s312 = int_to_ptr.vmem [resolvable:$true] %s311
      %317 = dma.vmem_to_hbm [thread:$0]  %s312, 1024, %s1, [#allocation3], 64, 64, 4
    $region9: #{stem_fwd.3} parent=1 // pred_fallthru
      _
    // Predicated region
    $region10: #{stem_fwd.3} parent=1 // pred_check
      _
    $region11: #{stem_fwd.3} parent=1 // pred_check_branch
      %319 = sbr.rel (0) target = $region13
    $region12: #{stem_fwd.3} parent=1 // pred_region
      %320 = dma.done [#allocation3], 1024
    $region13: #{stem_fwd.3} parent=1 // pred_fallthru
      _
    %321 = vsyncpa [#allocation3], 1

</llo_original>
